<compile_context>
chip_gen: v7x
topology: tpu7x:2x2x1
jax: 0.10.0
libtpu: 0.0.40
codegen_flags: <defaults>
</compile_context>

<pallas_src>
import functools
import math

import jax
import jax.numpy as jnp
import numpy as np
from jax.experimental import pallas as pl
from jax.experimental.pallas import tpu as pltpu


# ---------------------------------------------------------------------------
# Schedule (plain-JAX glue, mirrors cosine_beta_schedule from the PyTorch code)
# ---------------------------------------------------------------------------
def cosine_beta_schedule(T, s=0.008):
    steps = T + 1
    x = jnp.linspace(0.0, float(T), steps)
    alphas_cumprod = jnp.cos((x / T + s) / (1 + s) * math.pi * 0.5) ** 2
    alphas_cumprod = alphas_cumprod / alphas_cumprod[0]
    betas = 1.0 - alphas_cumprod[1:] / alphas_cumprod[:-1]
    return jnp.clip(betas, 0.0001, 0.9999)


# ---------------------------------------------------------------------------
# Kernel: grid = (pixel_tiles, time_blocks); each time-block runs S fused steps.
# ---------------------------------------------------------------------------
def _sampler_kernel(coefx_ref, coefn_ref,                       # SMEM scalar prefetch, (T,)
                    xT_ref, wn_ref, wlv_ref, bn_ref, blv_ref,   # VMEM inputs
                    noise_ref,                                  # VMEM (S, C, TN) bf16
                    out_ref,                                    # VMEM (C, TN) -- carries x_t
                    *, T, S):
    t_idx = pl.program_id(1)
    nT = pl.num_programs(1)

    @pl.when(t_idx == 0)
    def _():
        out_ref[...] = xT_ref[...]          # initialize carried state with x_T tile

    x = out_ref[...]                        # (C, TN) float32, carried across time axis
    wn = wn_ref[...]
    wlv = wlv_ref[...]
    bn = bn_ref[...]
    blv = blv_ref[...]

    for s in range(S):                      # statically unrolled fused sub-steps
        time_step = T - 1 - t_idx * S - s   # diffusion time step (T-1 .. 0)
        cx = coefx_ref[time_step]           # sqrt(a)/sqrt(ab) + sqrt(1-a)
        cn = coefn_ref[time_step]           # sqrt(a)*sqrt(1/ab - 1)

        # synthetic model(x_t, t): two separate (C,C)@(C,TN) products, no slicing
        pred_noise = 0.1 * jnp.tanh(
            jnp.dot(wn, x, preferred_element_type=jnp.float32) + bn)
        half_logvar = 0.05 * jnp.tanh(      # 0.5 * pred_logvar, scale folded in
            jnp.dot(wlv, x, preferred_element_type=jnp.float32) + blv)

        mean = cx * x - cn * pred_noise

        if s < S - 1:
            # interior sub-step: always add noise, keep x in registers
            x = mean + jnp.exp(half_logvar) * noise_ref[S - 1 - s].astype(jnp.float32)
        else:
            # last sub-step of this grid iteration: single store into out_ref
            @pl.when(t_idx < nT - 1)
            def _():
                out_ref[...] = (mean + jnp.exp(half_logvar)
                                * noise_ref[0].astype(jnp.float32))

            @pl.when(t_idx == nT - 1)
            def _():
                # global final step (time_step == 0): noise is zero, clip x_0
                out_ref[...] = jnp.clip(mean, -1.0, 1.0)


# ---------------------------------------------------------------------------
# Wrapper
# ---------------------------------------------------------------------------
def improved_ddpm_sample(x_T, w, b, noise, T, *, steps_per_block=None, pixel_tile=None):
    B, C, H, W = x_T.shape
    N = B * H * W
    assert noise.shape == (T, B, C, H, W)
    assert w.shape == (2 * C, C) and b.shape == (2 * C, 1)

    # schedule + folded per-step scalar coefficients
    betas = cosine_beta_schedule(T).astype(jnp.float32)
    alphas = 1.0 - betas
    alphas_bar = jnp.cumprod(alphas)
    sqrt_a = jnp.sqrt(alphas)
    coef_x = (sqrt_a / jnp.sqrt(alphas_bar) + jnp.sqrt(1.0 - alphas)).astype(jnp.float32)
    coef_n = (sqrt_a * jnp.sqrt(1.0 / alphas_bar - 1.0)).astype(jnp.float32)

    # fused diffusion steps per grid iteration
    if steps_per_block is None:
        steps_per_block = max(d for d in range(1, min(T, 8) + 1) if T % d == 0)
    S = int(steps_per_block)
    assert T % S == 0, "steps_per_block must divide T"
    nT = T // S

    # pixel tiling (lane axis); multiple of 128 or the full extent
    if pixel_tile is None:
        cands = [d for d in range(128, min(N, 4096) + 1, 128) if N % d == 0]
        pixel_tile = max(cands) if cands else N
    TN = int(pixel_tile)
    assert N % TN == 0, "pixel_tile must divide B*H*W"
    nP = N // TN

    # channel-major flattening: (B,C,H,W) -> (C, B*H*W); noise streamed as bf16
    x_cm = jnp.transpose(x_T, (1, 0, 2, 3)).reshape(C, N).astype(jnp.float32)
    noise_cm = jnp.transpose(noise, (0, 2, 1, 3, 4)).reshape(T, C, N).astype(jnp.bfloat16)

    w = w.astype(jnp.float32)
    b = b.astype(jnp.float32)
    w_n, w_lv = w[:C], w[C:]
    b_n, b_lv = b[:C], b[C:]

    grid_spec = pltpu.PrefetchScalarGridSpec(
        num_scalar_prefetch=2,
        grid=(nP, nT),
        in_specs=[
            pl.BlockSpec((C, TN), lambda p, t, *_: (0, p)),                 # x_T tile
            pl.BlockSpec((C, C), lambda p, t, *_: (0, 0)),                  # w (noise half)
            pl.BlockSpec((C, C), lambda p, t, *_: (0, 0)),                  # w (logvar half)
            pl.BlockSpec((C, 1), lambda p, t, *_: (0, 0)),                  # b (noise half)
            pl.BlockSpec((C, 1), lambda p, t, *_: (0, 0)),                  # b (logvar half)
            pl.BlockSpec((S, C, TN), lambda p, t, *_: (nT - 1 - t, 0, p)),  # noise block
        ],
        out_specs=pl.BlockSpec((C, TN), lambda p, t, *_: (0, p)),
    )

    kernel = functools.partial(_sampler_kernel, T=T, S=S)

    out_cm = pl.pallas_call(
        kernel,
        out_shape=jax.ShapeDtypeStruct((C, N), jnp.float32),
        grid_spec=grid_spec,
        compiler_params=pltpu.CompilerParams(
            dimension_semantics=("parallel", "arbitrary"),
            vmem_limit_bytes=64 * 1024 * 1024),
    )(coef_x, coef_n, x_cm, w_n, w_lv, b_n, b_lv, noise_cm)

    return jnp.transpose(out_cm.reshape(C, B, H, W), (1, 0, 2, 3))


# ---------------------------------------------------------------------------
# Pure-JAX reference (mirrors the PyTorch forward, same synthetic model/noise)
# ---------------------------------------------------------------------------
def reference_sampler(x_T, w, b, noise, T):
    betas = cosine_beta_schedule(T).astype(jnp.float32)
    alphas = 1.0 - betas
    alphas_bar = jnp.cumprod(alphas)
    B, C, H, W = x_T.shape
    x_t = x_T.astype(jnp.float32)
    for time_step in reversed(range(T)):
        mo = 0.1 * jnp.tanh(
            jnp.einsum("oc,nchw->nohw", w, x_t) + b.reshape(1, 2 * C, 1, 1))
        pred_noise, pred_logvar = mo[:, :C], mo[:, C:]
        ab = alphas_bar[time_step]
        a = alphas[time_step]
        pred_x0 = (1.0 / jnp.sqrt(ab)) * x_t - jnp.sqrt(1.0 / ab - 1.0) * pred_noise
        mean = jnp.sqrt(a) * pred_x0 + jnp.sqrt(1.0 - a) * x_t
        nz = noise[time_step] if time_step > 0 else 0.0
        x_t = mean + jnp.exp(0.5 * pred_logvar) * nz
    return jnp.clip(x_t, -1.0, 1.0)


if __name__ == "__main__":
    B, C, H, W = 2, 3, 16, 16     # 3-channel images; model outputs 2*C = 6 channels
    T = 10

    key = jax.random.PRNGKey(0)
    k1, k2, k3, k4 = jax.random.split(key, 4)
    x_T = jax.random.normal(k1, (B, C, H, W), dtype=jnp.float32)
    w = 0.2 * jax.random.normal(k2, (2 * C, C), dtype=jnp.float32)      # 1x1-conv weight
    b = 0.05 * jax.random.normal(k3, (2 * C, 1), dtype=jnp.float32)     # 1x1-conv bias
    noise = jax.random.normal(k4, (T, B, C, H, W), dtype=jnp.float32)   # randn_like per step
    # kernel streams noise as bf16; round-trip here so kernel & reference see identical noise
    noise = noise.astype(jnp.bfloat16).astype(jnp.float32)

    # S=5 fused steps per grid iter, 256-pixel tiles -> grid (2, 2): exercises
    # both the parallel pixel axis and the fused/carried time axis.
    out = improved_ddpm_sample(x_T, w, b, noise, T, steps_per_block=5, pixel_tile=256)
    out = jax.block_until_ready(out)

    ref = reference_sampler(x_T, w, b, noise, T)
    assert out.shape == (B, C, H, W)
    np.testing.assert_allclose(np.asarray(out), np.asarray(ref), rtol=2e-2, atol=2e-2)
    print("KERNEL_OK")
</pallas_src>

<mosaic_0001>
module attributes {stable_mosaic.version = 11 : i64} {
  func.func @_sampler_kernel(%arg0: i32, %arg1: i32, %arg2: memref<10xf32, #tpu.memory_space<smem>>, %arg3: memref<10xf32, #tpu.memory_space<smem>>, %arg4: memref<3x256xf32, #tpu.memory_space<vmem>>, %arg5: memref<3x3xf32, #tpu.memory_space<vmem>>, %arg6: memref<3x3xf32, #tpu.memory_space<vmem>>, %arg7: memref<3x1xf32, #tpu.memory_space<vmem>>, %arg8: memref<3x1xf32, #tpu.memory_space<vmem>>, %arg9: memref<5x3x256xbf16, #tpu.memory_space<vmem>>, %arg10: memref<3x256xf32, #tpu.memory_space<vmem>>) attributes {dimension_semantics = [#tpu.dimension_semantics<parallel>, #tpu.dimension_semantics<arbitrary>], iteration_bounds = array<i64: 2, 2>, scalar_prefetch = 2 : i64, scratch_operands = 0 : i64, tpu.core_type = #tpu.core_type<tc>, window_params = [{transform_indices = @transform_0, window_bounds = array<i64: 3, 256>}, {pipeline_mode = #tpu.pipeline_mode<synchronous>, transform_indices = @transform_1, window_bounds = array<i64: 3, 3>}, {pipeline_mode = #tpu.pipeline_mode<synchronous>, transform_indices = @transform_2, window_bounds = array<i64: 3, 3>}, {pipeline_mode = #tpu.pipeline_mode<synchronous>, transform_indices = @transform_3, window_bounds = array<i64: 3, 1>}, {pipeline_mode = #tpu.pipeline_mode<synchronous>, transform_indices = @transform_4, window_bounds = array<i64: 3, 1>}, {transform_indices = @transform_5, window_bounds = array<i64: 5, 3, 256>}, {transform_indices = @transform_6, window_bounds = array<i64: 3, 256>}]} {
    %c0_i32 = arith.constant 0 : i32
    %0 = arith.cmpi eq, %arg1, %c0_i32 : i32
    %1 = arith.extui %0 : i1 to i32
    %c0_i32_0 = arith.constant 0 : i32
    %2 = arith.cmpi ne, %1, %c0_i32_0 : i32
    scf.if %2 {
      %c0_50 = arith.constant 0 : index
      %c0_51 = arith.constant 0 : index
      %158 = vector.load %arg4[%c0_50, %c0_51] : memref<3x256xf32, #tpu.memory_space<vmem>>, vector<3x256xf32>
      %c0_52 = arith.constant 0 : index
      %c0_53 = arith.constant 0 : index
      %159 = vector.load %arg10[%c0_52, %c0_53] : memref<3x256xf32, #tpu.memory_space<vmem>>, vector<3x256xf32>
      tpu.vector_store %arg10[%c0_52, %c0_53], %158 {strides = array<i32>} : memref<3x256xf32, #tpu.memory_space<vmem>>, vector<3x256xf32>,
    } else {
    }
    %c0 = arith.constant 0 : index
    %c0_1 = arith.constant 0 : index
    %3 = vector.load %arg10[%c0, %c0_1] : memref<3x256xf32, #tpu.memory_space<vmem>>, vector<3x256xf32>
    %c0_2 = arith.constant 0 : index
    %c0_3 = arith.constant 0 : index
    %4 = vector.load %arg5[%c0_2, %c0_3] : memref<3x3xf32, #tpu.memory_space<vmem>>, vector<3x3xf32>
    %c0_4 = arith.constant 0 : index
    %c0_5 = arith.constant 0 : index
    %5 = vector.load %arg6[%c0_4, %c0_5] : memref<3x3xf32, #tpu.memory_space<vmem>>, vector<3x3xf32>
    %c0_6 = arith.constant 0 : index
    %c0_7 = arith.constant 0 : index
    %6 = vector.load %arg7[%c0_6, %c0_7] : memref<3x1xf32, #tpu.memory_space<vmem>>, vector<3x1xf32>
    %c0_8 = arith.constant 0 : index
    %c0_9 = arith.constant 0 : index
    %7 = vector.load %arg8[%c0_8, %c0_9] : memref<3x1xf32, #tpu.memory_space<vmem>>, vector<3x1xf32>
    %c5_i32 = arith.constant 5 : i32
    %8 = arith.muli %arg1, %c5_i32 : i32
    %c9_i32 = arith.constant 9 : i32
    %9 = arith.subi %c9_i32, %8 : i32
    %c0_i32_10 = arith.constant 0 : i32
    %10 = arith.subi %9, %c0_i32_10 : i32
    %11 = arith.index_cast %10 : i32 to index
    %12 = memref.load %arg2[%11] : memref<10xf32, #tpu.memory_space<smem>>
    %13 = arith.index_cast %10 : i32 to index
    %14 = memref.load %arg3[%13] : memref<10xf32, #tpu.memory_space<smem>>
    %cst = arith.constant dense<0.000000e+00> : vector<3x256xf32>
    %15 = tpu.matmul %4, %3, %cst {dimension_numbers = #tpu.dot_dimension_numbers<[1], [0], [0], [1], [0, 0, 1, 1], [], []>} : vector<3x3xf32>, vector<3x256xf32>, vector<3x256xf32> -> vector<3x256xf32>
    %16 = vector.broadcast %6 : vector<3x1xf32> to vector<3x256xf32>
    %17 = arith.addf %15, %16 : vector<3x256xf32>
    %18 = math.tanh %17 : vector<3x256xf32>
    %cst_11 = arith.constant 1.000000e-01 : f32
    %19 = vector.broadcast %cst_11 : f32 to vector<3x256xf32>
    %20 = arith.mulf %19, %18 : vector<3x256xf32>
    %cst_12 = arith.constant dense<0.000000e+00> : vector<3x256xf32>
    %21 = tpu.matmul %5, %3, %cst_12 {dimension_numbers = #tpu.dot_dimension_numbers<[1], [0], [0], [1], [0, 0, 1, 1], [], []>} : vector<3x3xf32>, vector<3x256xf32>, vector<3x256xf32> -> vector<3x256xf32>
    %22 = vector.broadcast %7 : vector<3x1xf32> to vector<3x256xf32>
    %23 = arith.addf %21, %22 : vector<3x256xf32>
    %24 = math.tanh %23 : vector<3x256xf32>
    %cst_13 = arith.constant 5.000000e-02 : f32
    %25 = vector.broadcast %cst_13 : f32 to vector<3x256xf32>
    %26 = arith.mulf %25, %24 : vector<3x256xf32>
    %27 = vector.broadcast %12 : f32 to vector<3x256xf32>
    %28 = arith.mulf %27, %3 : vector<3x256xf32>
    %29 = vector.broadcast %14 : f32 to vector<3x256xf32>
    %30 = arith.mulf %29, %20 : vector<3x256xf32>
    %31 = arith.subf %28, %30 : vector<3x256xf32>
    %32 = math.exp %26 : vector<3x256xf32>
    %c4 = arith.constant 4 : index
    %c0_14 = arith.constant 0 : index
    %c0_15 = arith.constant 0 : index
    %33 = vector.load %arg9[%c4, %c0_14, %c0_15] : memref<5x3x256xbf16, #tpu.memory_space<vmem>>, vector<1x3x256xbf16>
    %34 = vector.shape_cast %33 : vector<1x3x256xbf16> to vector<3x256xbf16>
    %35 = arith.extf %34 : vector<3x256xbf16> to vector<3x256xf32>
    %36 = arith.mulf %32, %35 : vector<3x256xf32>
    %37 = arith.addf %31, %36 : vector<3x256xf32>
    %c5_i32_16 = arith.constant 5 : i32
    %38 = arith.muli %arg1, %c5_i32_16 : i32
    %c9_i32_17 = arith.constant 9 : i32
    %39 = arith.subi %c9_i32_17, %38 : i32
    %c1_i32 = arith.constant 1 : i32
    %40 = arith.subi %39, %c1_i32 : i32
    %41 = arith.index_cast %40 : i32 to index
    %42 = memref.load %arg2[%41] : memref<10xf32, #tpu.memory_space<smem>>
    %43 = arith.index_cast %40 : i32 to index
    %44 = memref.load %arg3[%43] : memref<10xf32, #tpu.memory_space<smem>>
    %cst_18 = arith.constant dense<0.000000e+00> : vector<3x256xf32>
    %45 = tpu.matmul %4, %37, %cst_18 {dimension_numbers = #tpu.dot_dimension_numbers<[1], [0], [0], [1], [0, 0, 1, 1], [], []>} : vector<3x3xf32>, vector<3x256xf32>, vector<3x256xf32> -> vector<3x256xf32>
    %46 = vector.broadcast %6 : vector<3x1xf32> to vector<3x256xf32>
    %47 = arith.addf %45, %46 : vector<3x256xf32>
    %48 = math.tanh %47 : vector<3x256xf32>
    %cst_19 = arith.constant 1.000000e-01 : f32
    %49 = vector.broadcast %cst_19 : f32 to vector<3x256xf32>
    %50 = arith.mulf %49, %48 : vector<3x256xf32>
    %cst_20 = arith.constant dense<0.000000e+00> : vector<3x256xf32>
    %51 = tpu.matmul %5, %37, %cst_20 {dimension_numbers = #tpu.dot_dimension_numbers<[1], [0], [0], [1], [0, 0, 1, 1], [], []>} : vector<3x3xf32>, vector<3x256xf32>, vector<3x256xf32> -> vector<3x256xf32>
    %52 = vector.broadcast %7 : vector<3x1xf32> to vector<3x256xf32>
    %53 = arith.addf %51, %52 : vector<3x256xf32>
    %54 = math.tanh %53 : vector<3x256xf32>
    %cst_21 = arith.constant 5.000000e-02 : f32
    %55 = vector.broadcast %cst_21 : f32 to vector<3x256xf32>
    %56 = arith.mulf %55, %54 : vector<3x256xf32>
    %57 = vector.broadcast %42 : f32 to vector<3x256xf32>
    %58 = arith.mulf %57, %37 : vector<3x256xf32>
    %59 = vector.broadcast %44 : f32 to vector<3x256xf32>
    %60 = arith.mulf %59, %50 : vector<3x256xf32>
    %61 = arith.subf %58, %60 : vector<3x256xf32>
    %62 = math.exp %56 : vector<3x256xf32>
    %c3 = arith.constant 3 : index
    %c0_22 = arith.constant 0 : index
    %c0_23 = arith.constant 0 : index
    %63 = vector.load %arg9[%c3, %c0_22, %c0_23] : memref<5x3x256xbf16, #tpu.memory_space<vmem>>, vector<1x3x256xbf16>
    %64 = vector.shape_cast %63 : vector<1x3x256xbf16> to vector<3x256xbf16>
    %65 = arith.extf %64 : vector<3x256xbf16> to vector<3x256xf32>
    %66 = arith.mulf %62, %65 : vector<3x256xf32>
    %67 = arith.addf %61, %66 : vector<3x256xf32>
    %c5_i32_24 = arith.constant 5 : i32
    %68 = arith.muli %arg1, %c5_i32_24 : i32
    %c9_i32_25 = arith.constant 9 : i32
    %69 = arith.subi %c9_i32_25, %68 : i32
    %c2_i32 = arith.constant 2 : i32
    %70 = arith.subi %69, %c2_i32 : i32
    %71 = arith.index_cast %70 : i32 to index
    %72 = memref.load %arg2[%71] : memref<10xf32, #tpu.memory_space<smem>>
    %73 = arith.index_cast %70 : i32 to index
    %74 = memref.load %arg3[%73] : memref<10xf32, #tpu.memory_space<smem>>
    %cst_26 = arith.constant dense<0.000000e+00> : vector<3x256xf32>
    %75 = tpu.matmul %4, %67, %cst_26 {dimension_numbers = #tpu.dot_dimension_numbers<[1], [0], [0], [1], [0, 0, 1, 1], [], []>} : vector<3x3xf32>, vector<3x256xf32>, vector<3x256xf32> -> vector<3x256xf32>
    %76 = vector.broadcast %6 : vector<3x1xf32> to vector<3x256xf32>
    %77 = arith.addf %75, %76 : vector<3x256xf32>
    %78 = math.tanh %77 : vector<3x256xf32>
    %cst_27 = arith.constant 1.000000e-01 : f32
    %79 = vector.broadcast %cst_27 : f32 to vector<3x256xf32>
    %80 = arith.mulf %79, %78 : vector<3x256xf32>
    %cst_28 = arith.constant dense<0.000000e+00> : vector<3x256xf32>
    %81 = tpu.matmul %5, %67, %cst_28 {dimension_numbers = #tpu.dot_dimension_numbers<[1], [0], [0], [1], [0, 0, 1, 1], [], []>} : vector<3x3xf32>, vector<3x256xf32>, vector<3x256xf32> -> vector<3x256xf32>
    %82 = vector.broadcast %7 : vector<3x1xf32> to vector<3x256xf32>
    %83 = arith.addf %81, %82 : vector<3x256xf32>
    %84 = math.tanh %83 : vector<3x256xf32>
    %cst_29 = arith.constant 5.000000e-02 : f32
    %85 = vector.broadcast %cst_29 : f32 to vector<3x256xf32>
    %86 = arith.mulf %85, %84 : vector<3x256xf32>
    %87 = vector.broadcast %72 : f32 to vector<3x256xf32>
    %88 = arith.mulf %87, %67 : vector<3x256xf32>
    %89 = vector.broadcast %74 : f32 to vector<3x256xf32>
    %90 = arith.mulf %89, %80 : vector<3x256xf32>
    %91 = arith.subf %88, %90 : vector<3x256xf32>
    %92 = math.exp %86 : vector<3x256xf32>
    %c2 = arith.constant 2 : index
    %c0_30 = arith.constant 0 : index
    %c0_31 = arith.constant 0 : index
    %93 = vector.load %arg9[%c2, %c0_30, %c0_31] : memref<5x3x256xbf16, #tpu.memory_space<vmem>>, vector<1x3x256xbf16>
    %94 = vector.shape_cast %93 : vector<1x3x256xbf16> to vector<3x256xbf16>
    %95 = arith.extf %94 : vector<3x256xbf16> to vector<3x256xf32>
    %96 = arith.mulf %92, %95 : vector<3x256xf32>
    %97 = arith.addf %91, %96 : vector<3x256xf32>
    %c5_i32_32 = arith.constant 5 : i32
    %98 = arith.muli %arg1, %c5_i32_32 : i32
    %c9_i32_33 = arith.constant 9 : i32
    %99 = arith.subi %c9_i32_33, %98 : i32
    %c3_i32 = arith.constant 3 : i32
    %100 = arith.subi %99, %c3_i32 : i32
    %101 = arith.index_cast %100 : i32 to index
    %102 = memref.load %arg2[%101] : memref<10xf32, #tpu.memory_space<smem>>
    %103 = arith.index_cast %100 : i32 to index
    %104 = memref.load %arg3[%103] : memref<10xf32, #tpu.memory_space<smem>>
    %cst_34 = arith.constant dense<0.000000e+00> : vector<3x256xf32>
    %105 = tpu.matmul %4, %97, %cst_34 {dimension_numbers = #tpu.dot_dimension_numbers<[1], [0], [0], [1], [0, 0, 1, 1], [], []>} : vector<3x3xf32>, vector<3x256xf32>, vector<3x256xf32> -> vector<3x256xf32>
    %106 = vector.broadcast %6 : vector<3x1xf32> to vector<3x256xf32>
    %107 = arith.addf %105, %106 : vector<3x256xf32>
    %108 = math.tanh %107 : vector<3x256xf32>
    %cst_35 = arith.constant 1.000000e-01 : f32
    %109 = vector.broadcast %cst_35 : f32 to vector<3x256xf32>
    %110 = arith.mulf %109, %108 : vector<3x256xf32>
    %cst_36 = arith.constant dense<0.000000e+00> : vector<3x256xf32>
    %111 = tpu.matmul %5, %97, %cst_36 {dimension_numbers = #tpu.dot_dimension_numbers<[1], [0], [0], [1], [0, 0, 1, 1], [], []>} : vector<3x3xf32>, vector<3x256xf32>, vector<3x256xf32> -> vector<3x256xf32>
    %112 = vector.broadcast %7 : vector<3x1xf32> to vector<3x256xf32>
    %113 = arith.addf %111, %112 : vector<3x256xf32>
    %114 = math.tanh %113 : vector<3x256xf32>
    %cst_37 = arith.constant 5.000000e-02 : f32
    %115 = vector.broadcast %cst_37 : f32 to vector<3x256xf32>
    %116 = arith.mulf %115, %114 : vector<3x256xf32>
    %117 = vector.broadcast %102 : f32 to vector<3x256xf32>
    %118 = arith.mulf %117, %97 : vector<3x256xf32>
    %119 = vector.broadcast %104 : f32 to vector<3x256xf32>
    %120 = arith.mulf %119, %110 : vector<3x256xf32>
    %121 = arith.subf %118, %120 : vector<3x256xf32>
    %122 = math.exp %116 : vector<3x256xf32>
    %c1 = arith.constant 1 : index
    %c0_38 = arith.constant 0 : index
    %c0_39 = arith.constant 0 : index
    %123 = vector.load %arg9[%c1, %c0_38, %c0_39] : memref<5x3x256xbf16, #tpu.memory_space<vmem>>, vector<1x3x256xbf16>
    %124 = vector.shape_cast %123 : vector<1x3x256xbf16> to vector<3x256xbf16>
    %125 = arith.extf %124 : vector<3x256xbf16> to vector<3x256xf32>
    %126 = arith.mulf %122, %125 : vector<3x256xf32>
    %127 = arith.addf %121, %126 : vector<3x256xf32>
    %c5_i32_40 = arith.constant 5 : i32
    %128 = arith.muli %arg1, %c5_i32_40 : i32
    %c9_i32_41 = arith.constant 9 : i32
    %129 = arith.subi %c9_i32_41, %128 : i32
    %c4_i32 = arith.constant 4 : i32
    %130 = arith.subi %129, %c4_i32 : i32
    %131 = arith.index_cast %130 : i32 to index
    %132 = memref.load %arg2[%131] : memref<10xf32, #tpu.memory_space<smem>>
    %133 = arith.index_cast %130 : i32 to index
    %134 = memref.load %arg3[%133] : memref<10xf32, #tpu.memory_space<smem>>
    %cst_42 = arith.constant dense<0.000000e+00> : vector<3x256xf32>
    %135 = tpu.matmul %4, %127, %cst_42 {dimension_numbers = #tpu.dot_dimension_numbers<[1], [0], [0], [1], [0, 0, 1, 1], [], []>} : vector<3x3xf32>, vector<3x256xf32>, vector<3x256xf32> -> vector<3x256xf32>
    %136 = vector.broadcast %6 : vector<3x1xf32> to vector<3x256xf32>
    %137 = arith.addf %135, %136 : vector<3x256xf32>
    %138 = math.tanh %137 : vector<3x256xf32>
    %cst_43 = arith.constant 1.000000e-01 : f32
    %139 = vector.broadcast %cst_43 : f32 to vector<3x256xf32>
    %140 = arith.mulf %139, %138 : vector<3x256xf32>
    %cst_44 = arith.constant dense<0.000000e+00> : vector<3x256xf32>
    %141 = tpu.matmul %5, %127, %cst_44 {dimension_numbers = #tpu.dot_dimension_numbers<[1], [0], [0], [1], [0, 0, 1, 1], [], []>} : vector<3x3xf32>, vector<3x256xf32>, vector<3x256xf32> -> vector<3x256xf32>
    %142 = vector.broadcast %7 : vector<3x1xf32> to vector<3x256xf32>
    %143 = arith.addf %141, %142 : vector<3x256xf32>
    %144 = math.tanh %143 : vector<3x256xf32>
    %cst_45 = arith.constant 5.000000e-02 : f32
    %145 = vector.broadcast %cst_45 : f32 to vector<3x256xf32>
    %146 = arith.mulf %145, %144 : vector<3x256xf32>
    %147 = vector.broadcast %132 : f32 to vector<3x256xf32>
    %148 = arith.mulf %147, %127 : vector<3x256xf32>
    %149 = vector.broadcast %134 : f32 to vector<3x256xf32>
    %150 = arith.mulf %149, %140 : vector<3x256xf32>
    %151 = arith.subf %148, %150 : vector<3x256xf32>
    %c1_i32_46 = arith.constant 1 : i32
    %152 = arith.cmpi slt, %arg1, %c1_i32_46 : i32
    %153 = arith.extui %152 : i1 to i32
    %c0_i32_47 = arith.constant 0 : i32
    %154 = arith.cmpi ne, %153, %c0_i32_47 : i32
    scf.if %154 {
      %158 = math.exp %146 : vector<3x256xf32>
      %c0_50 = arith.constant 0 : index
      %c0_51 = arith.constant 0 : index
      %c0_52 = arith.constant 0 : index
      %159 = vector.load %arg9[%c0_50, %c0_51, %c0_52] : memref<5x3x256xbf16, #tpu.memory_space<vmem>>, vector<1x3x256xbf16>
      %160 = vector.shape_cast %159 : vector<1x3x256xbf16> to vector<3x256xbf16>
      %161 = arith.extf %160 : vector<3x256xbf16> to vector<3x256xf32>
      %162 = arith.mulf %158, %161 : vector<3x256xf32>
      %163 = arith.addf %151, %162 : vector<3x256xf32>
      %c0_53 = arith.constant 0 : index
      %c0_54 = arith.constant 0 : index
      %164 = vector.load %arg10[%c0_53, %c0_54] : memref<3x256xf32, #tpu.memory_space<vmem>>, vector<3x256xf32>
      tpu.vector_store %arg10[%c0_53, %c0_54], %163 {strides = array<i32>} : memref<3x256xf32, #tpu.memory_space<vmem>>, vector<3x256xf32>,
    } else {
    }
    %c1_i32_48 = arith.constant 1 : i32
    %155 = arith.cmpi eq, %arg1, %c1_i32_48 : i32
    %156 = arith.extui %155 : i1 to i32
    %c0_i32_49 = arith.constant 0 : i32
    %157 = arith.cmpi ne, %156, %c0_i32_49 : i32
    scf.if %157 {
      %cst_50 = arith.constant -1.000000e+00 : f32
      %cst_51 = arith.constant 1.000000e+00 : f32
      %158 = vector.broadcast %cst_50 : f32 to vector<3x256xf32>
      %159 = arith.maximumf %158, %151 : vector<3x256xf32>
      %160 = vector.broadcast %cst_51 : f32 to vector<3x256xf32>
      %161 = arith.minimumf %160, %159 : vector<3x256xf32>
      %c0_52 = arith.constant 0 : index
      %c0_53 = arith.constant 0 : index
      %162 = vector.load %arg10[%c0_52, %c0_53] : memref<3x256xf32, #tpu.memory_space<vmem>>, vector<3x256xf32>
      tpu.vector_store %arg10[%c0_52, %c0_53], %161 {strides = array<i32>} : memref<3x256xf32, #tpu.memory_space<vmem>>, vector<3x256xf32>,
    } else {
    }
    return
  }
  func.func @transform_0(%arg0: i32, %arg1: i32, %arg2: memref<10xf32, #tpu.memory_space<smem>>, %arg3: memref<10xf32, #tpu.memory_space<smem>>) -> (i32, i32) {
    %c0_i32 = arith.constant 0 : i32
    %c0_i32_0 = arith.constant 0 : i32
    return %c0_i32, %arg0 : i32, i32
  }
  func.func @transform_1(%arg0: i32, %arg1: i32, %arg2: memref<10xf32, #tpu.memory_space<smem>>, %arg3: memref<10xf32, #tpu.memory_space<smem>>) -> (i32, i32) {
    %c0_i32 = arith.constant 0 : i32
    %c0_i32_0 = arith.constant 0 : i32
    %c0_i32_1 = arith.constant 0 : i32
    return %c0_i32, %c0_i32_0 : i32, i32
  }
  func.func @transform_2(%arg0: i32, %arg1: i32, %arg2: memref<10xf32, #tpu.memory_space<smem>>, %arg3: memref<10xf32, #tpu.memory_space<smem>>) -> (i32, i32) {
    %c0_i32 = arith.constant 0 : i32
    %c0_i32_0 = arith.constant 0 : i32
    %c0_i32_1 = arith.constant 0 : i32
    return %c0_i32, %c0_i32_0 : i32, i32
  }
  func.func @transform_3(%arg0: i32, %arg1: i32, %arg2: memref<10xf32, #tpu.memory_space<smem>>, %arg3: memref<10xf32, #tpu.memory_space<smem>>) -> (i32, i32) {
    %c0_i32 = arith.constant 0 : i32
    %c0_i32_0 = arith.constant 0 : i32
    %c0_i32_1 = arith.constant 0 : i32
    return %c0_i32, %c0_i32_0 : i32, i32
  }
  func.func @transform_4(%arg0: i32, %arg1: i32, %arg2: memref<10xf32, #tpu.memory_space<smem>>, %arg3: memref<10xf32, #tpu.memory_space<smem>>) -> (i32, i32) {
    %c0_i32 = arith.constant 0 : i32
    %c0_i32_0 = arith.constant 0 : i32
    %c0_i32_1 = arith.constant 0 : i32
    return %c0_i32, %c0_i32_0 : i32, i32
  }
  func.func @transform_5(%arg0: i32, %arg1: i32, %arg2: memref<10xf32, #tpu.memory_space<smem>>, %arg3: memref<10xf32, #tpu.memory_space<smem>>) -> (i32, i32, i32) {
    %c1_i32 = arith.constant 1 : i32
    %0 = arith.subi %c1_i32, %arg1 : i32
    %c0_i32 = arith.constant 0 : i32
    %c0_i32_0 = arith.constant 0 : i32
    return %0, %c0_i32, %arg0 : i32, i32, i32
  }
  func.func @transform_6(%arg0: i32, %arg1: i32, %arg2: memref<10xf32, #tpu.memory_space<smem>>, %arg3: memref<10xf32, #tpu.memory_space<smem>>) -> (i32, i32) {
    %c0_i32 = arith.constant 0 : i32
    %c0_i32_0 = arith.constant 0 : i32
    return %c0_i32, %arg0 : i32, i32
  }
}

</mosaic_0001>

<llo_original>
// kernel: tpu_custom_call.1
$region0: #{tpu_custom_call.1}
  #allocation0 [shape = 'u32[]', space=smem, size = 0x4, offset = 0x4, fixed_abs, tag = 'smem constant byte address 0x4 - core index']
  #allocation1 [shape = 'u32[144,128]{1,0:T(1,128)}', space=vmem, size = 0x12000, scoped, tag = 'internal scratch']
  #allocation2 [shape = 's32[1]{0}', space=sflag, size = 0x4, scoped, tag = 'scoped memory for tpu_custom_call.1']
  #allocation3 [shape = 'u8[512]{0}', space=smem, size = 0x200, scoped, tag = 'prefetched SMEM operand 0']
  #allocation4 [shape = 'u8[512]{0}', space=smem, size = 0x200, scoped, tag = 'prefetched SMEM operand 1']
  %s0 = inlined_call_operand.hbm [shape: f32[10], index: 0, kind: input, shape index: {}]
  %s1 = inlined_call_operand.hbm [shape: f32[10], index: 1, kind: input, shape index: {}]
  %s2 = inlined_call_operand.hbm [shape: f32[3,512], index: 2, kind: input, shape index: {}]
  %s3 = inlined_call_operand.hbm [shape: f32[3,3], index: 3, kind: input, shape index: {}]
  %s4 = inlined_call_operand.hbm [shape: f32[3,3], index: 4, kind: input, shape index: {}]
  %s5 = inlined_call_operand.hbm [shape: f32[3,1], index: 5, kind: input, shape index: {}]
  %s6 = inlined_call_operand.hbm [shape: f32[3,1], index: 6, kind: input, shape index: {}]
  %s7 = inlined_call_operand.hbm [shape: bf16[10,3,512], index: 7, kind: input, shape index: {}]
  %s8 = inlined_call_operand.hbm [shape: f32[3,512], index: 8, kind: output, shape index: {}]
  %s9 = sld [smem:[#allocation0]]
  $region93: #{tpu_custom_call.1} parent=0
    _
  %s11 = ssub.s32 1, %s9
  %s12 = scalar_select 0, %s11, %s9
  %14 = dma.hbm_to_smem %s0, 16, [#allocation3], [#allocation2]
  %16 = dma.hbm_to_smem %s1, 16, [#allocation4], [#allocation2]
  %17 = dma.done [#allocation2], 32
  %18 = sfence
  $region1: #{tpu_custom_call.1} parent=0
    #allocation5 [shape = 'u8[8192]{0}', space=vmem, size = 0x2000, scoped, tag = 'input window, operand 2']
    #allocation6 [shape = 's32[2]{0}', space=sflag, size = 0x8, scoped, tag = 'scoped memory for tpu_custom_call.1']
    #allocation7 [shape = 's32[2]{0}', space=sflag, size = 0x8, scoped, tag = 'scoped memory for tpu_custom_call.1']
    #allocation8 [shape = 'u8[2048]{0}', space=vmem, size = 0x800, scoped, tag = 'input window, operand 3, single buffered']
    #allocation9 [shape = 's32[1]{0}', space=sflag, size = 0x4, scoped, tag = 'scoped memory for tpu_custom_call.1']
    #allocation10 [shape = 'u8[2048]{0}', space=vmem, size = 0x800, scoped, tag = 'input window, operand 4, single buffered']
    #allocation11 [shape = 'u8[2048]{0}', space=vmem, size = 0x800, scoped, tag = 'input window, operand 5, single buffered']
    #allocation12 [shape = 's32[1]{0}', space=sflag, size = 0x4, scoped, tag = 'scoped memory for tpu_custom_call.1']
    #allocation13 [shape = 'u8[2048]{0}', space=vmem, size = 0x800, scoped, tag = 'input window, operand 6, single buffered']
    #allocation14 [shape = 'u8[20480]{0}', space=vmem, size = 0x5000, scoped, tag = 'input window, operand 7']
    #allocation15 [shape = 's32[2]{0}', space=sflag, size = 0x8, scoped, tag = 'scoped memory for tpu_custom_call.1']
    #allocation16 [shape = 'u8[8192]{0}', space=vmem, size = 0x2000, scoped, tag = 'output window, operand 0']
    %19 = vsyncpa [#allocation6], 0
    %s20 = scalar_lea.sflag [#allocation6], 1
    %21 = vsyncpa %s20, 0
    %22 = vsyncpa [#allocation9], 0
    %23 = vsyncpa [#allocation12], 0
    %24 = vsyncpa [#allocation15], 0
    %s25 = scalar_lea.sflag [#allocation15], 1
    %26 = vsyncpa %s25, 0
    %27 = vsyncpa [#allocation7], 0
    %s28 = scalar_lea.sflag [#allocation7], 1
    %29 = vsyncpa %s28, 0
    loop: start=0, step=1, limit=6
    $region2: #{tpu_custom_call.1} parent=1 // loop_pre_header
      _
    $region3: #{tpu_custom_call.1} parent=1 // loop_header
      %s31 = sphi 0, %s35
      %p32 = scmp.ge.s32.totalorder %s31, 6
      %s38 = sphi 0, %s50
      %s39 = sphi 0, %s46
      %s40 = sphi 0, %s38
      %s41 = sphi 0, %s39
      %s42 = sphi 0, %s40
      %s43 = sphi 0, %s41
      %s53 = sphi 0, %s55
      %s56 = sphi 0, %s53
      %s57 = sphi 0, %s56
      %s73 = sphi 0, %s57
      %s77 = sphi 0, %s77
      %s79 = sphi 0, %s77
      %s80 = sphi 0, %s79
      %s94 = sphi 0, %s80
      %s98 = sphi 0, %s98
      %s100 = sphi 0, %s98
      %s101 = sphi 0, %s100
      %s115 = sphi 0, %s101
      %s119 = sphi 0, %s119
      %s121 = sphi 0, %s119
      %s122 = sphi 0, %s121
      %s136 = sphi 0, %s122
      %s140 = sphi 0, %s140
      %s142 = sphi 0, %s140
      %s143 = sphi 0, %s142
      %s157 = sphi 0, %s143
      %s167 = sphi 0, %s169
      %s170 = sphi 0, %s167
      %s171 = sphi 0, %s170
      %s187 = sphi 0, %s171
      %s193 = sphi 0, %s195
      %s196 = sphi 0, %s193
      %s197 = sphi 0, %s196
      %s213 = sphi 0, %s197
    $region4: #{tpu_custom_call.1} parent=1 // loop_header_branch
      %34 = sbr.rel (%p32) target = $region8
    $region5: #{tpu_custom_call.1} parent=1 // loop_body
      %s36 = ssub.s32 %s31, 1
      %s37 = ssub.s32 %s31, 2
      %s44 = sadd.s32 1, %s39
      %p45 = scmp.ge.s32.totalorder %s44, 2
      %s46 = scalar_select %p45, 0, %s44
      %s47 = sadd.s32 1, %s38
      %s48 = scalar_select %p45, %s47, %s38
      %p49 = scmp.ge.s32.totalorder %s48, 2
      %s50 = scalar_select %p49, 0, %s48
      %s51 = ssub.s32 %s38, %s50
      %p52 = scmp.eq.s32.totalorder %s51, 0
      %s54 = sadd.s32 %s53, 1
      %s55 = scalar_select %p52, %s53, %s54
      %p58 = pneg %p52
      %p59 = scmp.eq.s32.totalorder %s31, 3
      %p60 = por %p58, %p59
      %p61 = scmp.ne.s32.totalorder %s53, %s56
      %p62 = scmp.eq.s32.totalorder %s31, 0
      %p63 = por %p61, %p62
      %p64 = scmp.ne.s32.totalorder %s53, %s56
      %p65 = scmp.eq.s32.totalorder %s36, 3
      %p66 = por %p64, %p65
      %p67 = scmp.ne.s32.totalorder %s56, %s57
      %p68 = scmp.eq.s32.totalorder %s36, 0
      %p69 = por %p67, %p68
      %p70 = scmp.ne.s32.totalorder %s56, %s57
      %p71 = scmp.eq.s32.totalorder %s37, 3
      %p72 = por %p70, %p71
      %p74 = scmp.ne.s32.totalorder %s57, %s73
      %p75 = scmp.eq.s32.totalorder %s37, 0
      %p76 = por %p74, %p75
      %s78 = sadd.s32 %s77, 1
      %p81 = scmp.eq.s32.totalorder %s31, 3
      %p82 = scmp.ne.s32.totalorder %s77, %s79
      %p83 = scmp.eq.s32.totalorder %s31, 0
      %p84 = por %p82, %p83
      %p85 = scmp.ne.s32.totalorder %s77, %s79
      %p86 = scmp.eq.s32.totalorder %s36, 3
      %p87 = por %p85, %p86
      %p88 = scmp.ne.s32.totalorder %s79, %s80
      %p89 = scmp.eq.s32.totalorder %s36, 0
      %p90 = por %p88, %p89
      %p91 = scmp.ne.s32.totalorder %s79, %s80
      %p92 = scmp.eq.s32.totalorder %s37, 3
      %p93 = por %p91, %p92
      %p95 = scmp.ne.s32.totalorder %s80, %s94
      %p96 = scmp.eq.s32.totalorder %s37, 0
      %p97 = por %p95, %p96
      %s99 = sadd.s32 %s98, 1
      %p102 = scmp.eq.s32.totalorder %s31, 3
      %p103 = scmp.ne.s32.totalorder %s98, %s100
      %p104 = scmp.eq.s32.totalorder %s31, 0
      %p105 = por %p103, %p104
      %p106 = scmp.ne.s32.totalorder %s98, %s100
      %p107 = scmp.eq.s32.totalorder %s36, 3
      %p108 = por %p106, %p107
      %p109 = scmp.ne.s32.totalorder %s100, %s101
      %p110 = scmp.eq.s32.totalorder %s36, 0
      %p111 = por %p109, %p110
      %p112 = scmp.ne.s32.totalorder %s100, %s101
      %p113 = scmp.eq.s32.totalorder %s37, 3
      %p114 = por %p112, %p113
      %p116 = scmp.ne.s32.totalorder %s101, %s115
      %p117 = scmp.eq.s32.totalorder %s37, 0
      %p118 = por %p116, %p117
      %s120 = sadd.s32 %s119, 1
      %p123 = scmp.eq.s32.totalorder %s31, 3
      %p124 = scmp.ne.s32.totalorder %s119, %s121
      %p125 = scmp.eq.s32.totalorder %s31, 0
      %p126 = por %p124, %p125
      %p127 = scmp.ne.s32.totalorder %s119, %s121
      %p128 = scmp.eq.s32.totalorder %s36, 3
      %p129 = por %p127, %p128
      %p130 = scmp.ne.s32.totalorder %s121, %s122
      %p131 = scmp.eq.s32.totalorder %s36, 0
      %p132 = por %p130, %p131
      %p133 = scmp.ne.s32.totalorder %s121, %s122
      %p134 = scmp.eq.s32.totalorder %s37, 3
      %p135 = por %p133, %p134
      %p137 = scmp.ne.s32.totalorder %s122, %s136
      %p138 = scmp.eq.s32.totalorder %s37, 0
      %p139 = por %p137, %p138
      %s141 = sadd.s32 %s140, 1
      %p144 = scmp.eq.s32.totalorder %s31, 3
      %p145 = scmp.ne.s32.totalorder %s140, %s142
      %p146 = scmp.eq.s32.totalorder %s31, 0
      %p147 = por %p145, %p146
      %p148 = scmp.ne.s32.totalorder %s140, %s142
      %p149 = scmp.eq.s32.totalorder %s36, 3
      %p150 = por %p148, %p149
      %p151 = scmp.ne.s32.totalorder %s142, %s143
      %p152 = scmp.eq.s32.totalorder %s36, 0
      %p153 = por %p151, %p152
      %p154 = scmp.ne.s32.totalorder %s142, %s143
      %p155 = scmp.eq.s32.totalorder %s37, 3
      %p156 = por %p154, %p155
      %p158 = scmp.ne.s32.totalorder %s143, %s157
      %p159 = scmp.eq.s32.totalorder %s37, 0
      %p160 = por %p158, %p159
      %s161 = ssub.s32 1, %s39
      %s162 = ssub.s32 1, %s46
      %s163 = ssub.s32 %s161, %s162
      %s164 = ssub.s32 %s38, %s50
      %s165 = sor.u32 %s163, %s164
      %p166 = scmp.eq.s32.totalorder %s165, 0
      %s168 = sadd.s32 %s167, 1
      %s169 = scalar_select %p166, %s167, %s168
      %p172 = pneg %p166
      %p173 = scmp.eq.s32.totalorder %s31, 3
      %p174 = por %p172, %p173
      %p175 = scmp.ne.s32.totalorder %s167, %s170
      %p176 = scmp.eq.s32.totalorder %s31, 0
      %p177 = por %p175, %p176
      %p178 = scmp.ne.s32.totalorder %s167, %s170
      %p179 = scmp.eq.s32.totalorder %s36, 3
      %p180 = por %p178, %p179
      %p181 = scmp.ne.s32.totalorder %s170, %s171
      %p182 = scmp.eq.s32.totalorder %s36, 0
      %p183 = por %p181, %p182
      %p184 = scmp.ne.s32.totalorder %s170, %s171
      %p185 = scmp.eq.s32.totalorder %s37, 3
      %p186 = por %p184, %p185
      %p188 = scmp.ne.s32.totalorder %s171, %s187
      %p189 = scmp.eq.s32.totalorder %s37, 0
      %p190 = por %p188, %p189
      %s191 = ssub.s32 %s38, %s50
      %p192 = scmp.eq.s32.totalorder %s191, 0
      %s194 = sadd.s32 %s193, 1
      %s195 = scalar_select %p192, %s193, %s194
      %p198 = pneg %p192
      %p199 = scmp.eq.s32.totalorder %s31, 3
      %p200 = por %p198, %p199
      %p201 = scmp.ne.s32.totalorder %s193, %s196
      %p202 = scmp.eq.s32.totalorder %s31, 0
      %p203 = por %p201, %p202
      %p204 = scmp.ne.s32.totalorder %s193, %s196
      %p205 = scmp.eq.s32.totalorder %s36, 3
      %p206 = por %p204, %p205
      %p207 = scmp.ne.s32.totalorder %s196, %s197
      %p208 = scmp.eq.s32.totalorder %s36, 0
      %p209 = por %p207, %p208
      %p210 = scmp.ne.s32.totalorder %s196, %s197
      %p211 = scmp.eq.s32.totalorder %s37, 3
      %p212 = por %p210, %p211
      %p214 = scmp.ne.s32.totalorder %s197, %s213
      %p215 = scmp.eq.s32.totalorder %s37, 0
      %p216 = por %p214, %p215
      %p217 = scmp.le.s32.totalorder 1, %s31
      %p218 = scmp.lt.s32.totalorder %s31, 5
      %p219 = pnand %p217, %p218
      %p220 = pneg %p219
      // Predicated region
      $region9: #{tpu_custom_call.1} parent=5 // pred_check
        _
      $region10: #{tpu_custom_call.1} parent=5 // pred_check_branch
        %222 = sbr.rel (%p219) target = $region12
      $region11: #{tpu_custom_call.1} parent=5 // pred_region
        %s223 = ssub.s32 %s31, 1
        // Predicated region
        $region13: #{tpu_custom_call.1} parent=11 // pred_check
          %p224 = pneg %p90
        $region14: #{tpu_custom_call.1} parent=11 // pred_check_branch
          %226 = sbr.rel (%p224) target = $region16
        $region15: #{tpu_custom_call.1} parent=11 // pred_region
          %s228 = ssub.s32 64, 64
          %229 = vsyncadd [#allocation9], %s228
          %s231 = sshll.u32 [#allocation8], 4
          %s232 = int_to_ptr.vmem [resolvable:$true] %s231
          %234 = dma.hbm_to_vmem [thread:$0]  %s3, 64, %s232, [#allocation9]
        $region16: #{tpu_custom_call.1} parent=11 // pred_fallthru
          _
        // Predicated region
        $region17: #{tpu_custom_call.1} parent=11 // pred_check
          %p235 = pneg %p111
        $region18: #{tpu_custom_call.1} parent=11 // pred_check_branch
          %237 = sbr.rel (%p235) target = $region20
        $region19: #{tpu_custom_call.1} parent=11 // pred_region
          %s239 = ssub.s32 64, 64
          %240 = vsyncadd [#allocation9], %s239
          %s242 = sshll.u32 [#allocation10], 4
          %s243 = int_to_ptr.vmem [resolvable:$true] %s242
          %245 = dma.hbm_to_vmem [thread:$0]  %s4, 64, %s243, [#allocation9]
        $region20: #{tpu_custom_call.1} parent=11 // pred_fallthru
          _
        // Predicated region
        $region21: #{tpu_custom_call.1} parent=11 // pred_check
          %p246 = pneg %p132
        $region22: #{tpu_custom_call.1} parent=11 // pred_check_branch
          %248 = sbr.rel (%p246) target = $region24
        $region23: #{tpu_custom_call.1} parent=11 // pred_region
          %s250 = ssub.s32 64, 64
          %251 = vsyncadd [#allocation12], %s250
          %s253 = sshll.u32 [#allocation11], 4
          %s254 = int_to_ptr.vmem [resolvable:$true] %s253
          %256 = dma.hbm_to_vmem [thread:$0]  %s5, 64, %s254, [#allocation12]
        $region24: #{tpu_custom_call.1} parent=11 // pred_fallthru
          _
        // Predicated region
        $region25: #{tpu_custom_call.1} parent=11 // pred_check
          %p257 = pneg %p153
        $region26: #{tpu_custom_call.1} parent=11 // pred_check_branch
          %259 = sbr.rel (%p257) target = $region28
        $region27: #{tpu_custom_call.1} parent=11 // pred_region
          %s261 = ssub.s32 64, 64
          %262 = vsyncadd [#allocation12], %s261
          %s264 = sshll.u32 [#allocation13], 4
          %s265 = int_to_ptr.vmem [resolvable:$true] %s264
          %267 = dma.hbm_to_vmem [thread:$0]  %s6, 64, %s265, [#allocation12]
        $region28: #{tpu_custom_call.1} parent=11 // pred_fallthru
          _
      $region12: #{tpu_custom_call.1} parent=5 // pred_fallthru
        _
      %p268 = scmp.lt.s32.totalorder %s31, 4
      // Predicated region
      $region29: #{tpu_custom_call.1} parent=5 // pred_check
        %p269 = pneg %p268
      $region30: #{tpu_custom_call.1} parent=5 // pred_check_branch
        %271 = sbr.rel (%p269) target = $region32
      $region31: #{tpu_custom_call.1} parent=5 // pred_region
        // Predicated region
        $region33: #{tpu_custom_call.1} parent=31 // pred_check
          %p272 = pneg %p63
        $region34: #{tpu_custom_call.1} parent=31 // pred_check_branch
          %274 = sbr.rel (%p272) target = $region36
        $region35: #{tpu_custom_call.1} parent=31 // pred_region
          %s275 = sand.u32 %s53, 1
          %s276 = scalar_lea.sflag [#allocation6], %s275
          %s277 = sand.u32 %s53, 1
          %s278 = smul.addr %s277, 8
          %s279 = scalar_lea.vmem [#allocation5], %s278
          %s280 = smul.u32 2, %s38
          %s282 = ssub.s32 128, 128
          %283 = vsyncadd %s276, %s282
          %s284 = smul.addr %s280, 64
          %s285 = scalar_lea.hbm %s2, %s284
          %s287 = sshll.u32 %s279, 4
          %s288 = int_to_ptr.vmem [resolvable:$true] %s287
          %290 = dma.hbm_to_vmem [thread:$0]  %s285, 128, %s288, %s276
        $region36: #{tpu_custom_call.1} parent=31 // pred_fallthru
          _
        // Predicated region
        $region37: #{tpu_custom_call.1} parent=31 // pred_check
          %p291 = pneg %p177
        $region38: #{tpu_custom_call.1} parent=31 // pred_check_branch
          %293 = sbr.rel (%p291) target = $region40
        $region39: #{tpu_custom_call.1} parent=31 // pred_region
          %s294 = sand.u32 %s167, 1
          %s295 = scalar_lea.sflag [#allocation15], %s294
          %s296 = sand.u32 %s167, 1
          %s297 = smul.addr %s296, 20
          %s298 = scalar_lea.vmem [#allocation14], %s297
          %s299 = ssub.s32 1, %s39
          %s300 = smul.u32 5, %s299
          %s301 = smul.u32 2, %s38
          %s303 = ssub.s32 320, 320
          %304 = vsyncadd %s295, %s303
          %s305 = smul.addr %s300, 4
          %s306 = sadd.s32 %s301, %s305
          %s307 = smul.addr %s306, 32
          %s308 = scalar_lea.hbm %s7, %s307
          %s309 = sshll.u32 %s298, 4
          %s310 = int_to_ptr.vmem [resolvable:$true] %s309
          %315 = dma.hbm_to_vmem [thread:$0]  %s308, 320, %s310, %s295, 128, 64, 4
        $region40: #{tpu_custom_call.1} parent=31 // pred_fallthru
          _
      $region32: #{tpu_custom_call.1} parent=5 // pred_fallthru
        _
      %p316 = scmp.le.s32.totalorder 1, %s31
      %p317 = scmp.lt.s32.totalorder %s31, 5
      %p318 = pnand %p316, %p317
      %p319 = pneg %p318
      // Predicated region
      $region41: #{tpu_custom_call.1} parent=5 // pred_check
        _
      $region42: #{tpu_custom_call.1} parent=5 // pred_check_branch
        %321 = sbr.rel (%p318) target = $region44
      $region43: #{tpu_custom_call.1} parent=5 // pred_region
        %s322 = ssub.s32 %s31, 1
        %s323 = sand.u32 %s56, 1
        %s324 = scalar_lea.sflag [#allocation6], %s323
        %s325 = sand.u32 %s56, 1
        %s326 = smul.addr %s325, 8
        %s327 = scalar_lea.vmem [#allocation5], %s326
        // Predicated region
        $region45: #{tpu_custom_call.1} parent=43 // pred_check
          %p328 = pneg %p69
        $region46: #{tpu_custom_call.1} parent=43 // pred_check_branch
          %330 = sbr.rel (%p328) target = $region48
        $region47: #{tpu_custom_call.1} parent=43 // pred_region
          %331 = dma.done %s324, 128
        $region48: #{tpu_custom_call.1} parent=43 // pred_fallthru
          _
        // Predicated region
        $region49: #{tpu_custom_call.1} parent=43 // pred_check
          %p332 = pneg %p90
        $region50: #{tpu_custom_call.1} parent=43 // pred_check_branch
          %334 = sbr.rel (%p332) target = $region52
        $region51: #{tpu_custom_call.1} parent=43 // pred_region
          %335 = dma.done [#allocation9], 64
        $region52: #{tpu_custom_call.1} parent=43 // pred_fallthru
          _
        // Predicated region
        $region53: #{tpu_custom_call.1} parent=43 // pred_check
          %p336 = pneg %p111
        $region54: #{tpu_custom_call.1} parent=43 // pred_check_branch
          %338 = sbr.rel (%p336) target = $region56
        $region55: #{tpu_custom_call.1} parent=43 // pred_region
          %339 = dma.done [#allocation9], 64
        $region56: #{tpu_custom_call.1} parent=43 // pred_fallthru
          _
        // Predicated region
        $region57: #{tpu_custom_call.1} parent=43 // pred_check
          %p340 = pneg %p132
        $region58: #{tpu_custom_call.1} parent=43 // pred_check_branch
          %342 = sbr.rel (%p340) target = $region60
        $region59: #{tpu_custom_call.1} parent=43 // pred_region
          %343 = dma.done [#allocation12], 64
        $region60: #{tpu_custom_call.1} parent=43 // pred_fallthru
          _
        // Predicated region
        $region61: #{tpu_custom_call.1} parent=43 // pred_check
          %p344 = pneg %p153
        $region62: #{tpu_custom_call.1} parent=43 // pred_check_branch
          %346 = sbr.rel (%p344) target = $region64
        $region63: #{tpu_custom_call.1} parent=43 // pred_region
          %347 = dma.done [#allocation12], 64
        $region64: #{tpu_custom_call.1} parent=43 // pred_fallthru
          _
        %s348 = sand.u32 %s170, 1
        %s349 = scalar_lea.sflag [#allocation15], %s348
        %s350 = sand.u32 %s170, 1
        %s351 = smul.addr %s350, 20
        %s352 = scalar_lea.vmem [#allocation14], %s351
        // Predicated region
        $region65: #{tpu_custom_call.1} parent=43 // pred_check
          %p353 = pneg %p183
        $region66: #{tpu_custom_call.1} parent=43 // pred_check_branch
          %355 = sbr.rel (%p353) target = $region68
        $region67: #{tpu_custom_call.1} parent=43 // pred_region
          %356 = dma.done %s349, 320
        $region68: #{tpu_custom_call.1} parent=43 // pred_fallthru
          _
        %s357 = sand.u32 %s56, 1
        %s358 = scalar_lea.sflag [#allocation6], %s357
        %s359 = sand.u32 %s56, 1
        %s360 = smul.addr %s359, 8
        %s361 = scalar_lea.vmem [#allocation5], %s360
        %p362 = pneg %p69
        %p363 = pneg %p66
        %p364 = pneg %p90
        %p365 = pneg %p87
        %p366 = pneg %p111
        %p367 = pneg %p108
        %p368 = pneg %p132
        %p369 = pneg %p129
        %p370 = pneg %p153
        %p371 = pneg %p150
        %s372 = sand.u32 %s170, 1
        %s373 = scalar_lea.sflag [#allocation15], %s372
        %s374 = sand.u32 %s170, 1
        %s375 = smul.addr %s374, 20
        %s376 = scalar_lea.vmem [#allocation14], %s375
        %p377 = pneg %p183
        %p378 = pneg %p180
        %p379 = pneg %p209
        %p380 = pneg %p206
        %s381 = sand.u32 %s196, 1
        %s382 = scalar_lea.sflag [#allocation7], %s381
        %s383 = sand.u32 %s196, 1
        %s384 = smul.addr %s383, 8
        %s385 = scalar_lea.vmem [#allocation16], %s384
        %s386 = smul.u32 2, %s40
        %s387 = ssub.s32 1, %s41
        %s388 = smul.u32 5, %s387
        %s389 = smul.u32 2, %s40
        %s390 = smul.u32 2, %s40
        %p391 = scmp.eq.s32.totalorder %s41, 0
        // Predicated region
        $region69: #{tpu_custom_call.1} parent=43 // pred_check
          %p392 = pneg %p391
        $region70: #{tpu_custom_call.1} parent=43 // pred_check_branch
          %394 = sbr.rel (%p392) target = $region72
        $region71: #{tpu_custom_call.1} parent=43 // pred_region
          %v395 = vld [vmem:[%s327] sm:$0x77]
          %396 = vst [vmem:[%s385] sm:$0x77] %v395
        $region72: #{tpu_custom_call.1} parent=43 // pred_fallthru
          _
        %v397 = vld [vmem:[%s385] sm:$0x77]
        %v398 = vld [vmem:[#allocation8] sm:$0x7]
        %v399 = vld [vmem:[#allocation10] sm:$0x7]
        %v400 = vld [vmem:[#allocation11] sm:$0x7]
        %v401 = vld [vmem:[#allocation13] sm:$0x7]
        %s402 = smul.u32 %s41, 5
        %s403 = ssub.s32 9, %s402
        %s404 = sld [smem:[#allocation3 + %s403]]
        %s405 = sld [smem:[#allocation4 + %s403]]
        %407 = vset.pattern.permute.xlu0 0
        %408 = vperm.xlu0 %407, %v400
        %v409 = vpop.permute.xlu0 %408
        %v412 = vcombine.high %v397, %v397
        %vm413 = vcmask 23552
        %v415 = vsel %vm413, %v398, 0
        %vm417 = vcmask 1042432
        %v418 = vsel %vm417, %v397, 0
        %v420 = vsel %vm417, %v412, 0
        %422 = vmatprep.subr.mxu0 %v420
        %423 = vmatpush1.msra.mxu0 %v418
        %424 = vmatprep.subr.mxu0 0.0
        %425 = vmatpush1.msra.mxu0 0.0
        %426 = vmatprep.subr.mxu0 0.0
        %427 = vmatpush1.msra.mxu0 0.0
        %428 = vmatprep.subr.mxu0 0.0
        %429 = vmatpush1.msra.mxu0 0.0
        %430 = vmatprep.subr.mxu0 0.0
        %431 = vmatpush1.msra.mxu0 0.0
        %432 = vmatprep.subr.mxu0 0.0
        %433 = vmatpush1.msra.mxu0 0.0
        %434 = vmatprep.subr.mxu0 0.0
        %435 = vmatpush1.msra.mxu0 0.0
        %436 = vmatprep.subr.mxu0 0.0
        %437 = vmatpush1.msra.mxu0 0.0
        %438 = vmatprep.subr.mxu0 0.0
        %439 = vmatpush1.msra.mxu0 0.0
        %440 = vmatprep.subr.mxu0 0.0
        %441 = vmatpush1.msra.mxu0 0.0
        %442 = vmatprep.subr.mxu0 0.0
        %443 = vmatpush1.msra.mxu0 0.0
        %444 = vmatprep.subr.mxu0 0.0
        %445 = vmatpush1.msra.mxu0 0.0
        %446 = vmatprep.subr.mxu0 0.0
        %447 = vmatpush1.msra.mxu0 0.0
        %448 = vmatprep.subr.mxu0 0.0
        %449 = vmatpush1.msra.mxu0 0.0
        %450 = vmatprep.subr.mxu0 0.0
        %451 = vmatpush1.msra.mxu0 0.0
        %452 = vmatprep.subr.mxu0 0.0
        %453 = vmatpush1.msra.mxu0 0.0
        %454 = vmatprep.subr.mxu0 0.0
        %455 = vmatpush1.msra.mxu0 0.0
        %456 = vmatprep.subr.mxu0 0.0
        %457 = vmatpush1.msra.mxu0 0.0
        %458 = vmatprep.subr.mxu0 0.0
        %459 = vmatpush1.msra.mxu0 0.0
        %460 = vmatprep.subr.mxu0 0.0
        %461 = vmatpush1.msra.mxu0 0.0
        %462 = vmatprep.subr.mxu0 0.0
        %463 = vmatpush1.msra.mxu0 0.0
        %464 = vmatprep.subr.mxu0 0.0
        %465 = vmatpush1.msra.mxu0 0.0
        %466 = vmatprep.subr.mxu0 0.0
        %467 = vmatpush1.msra.mxu0 0.0
        %468 = vmatprep.subr.mxu0 0.0
        %469 = vmatpush1.msra.mxu0 0.0
        %470 = vmatprep.subr.mxu0 0.0
        %471 = vmatpush1.msra.mxu0 0.0
        %472 = vmatprep.subr.mxu0 0.0
        %473 = vmatpush1.msra.mxu0 0.0
        %474 = vmatprep.subr.mxu0 0.0
        %475 = vmatpush1.msra.mxu0 0.0
        %476 = vmatprep.subr.mxu0 0.0
        %477 = vmatpush1.msra.mxu0 0.0
        %478 = vmatprep.subr.mxu0 0.0
        %479 = vmatpush1.msra.mxu0 0.0
        %480 = vmatprep.subr.mxu0 0.0
        %481 = vmatpush1.msra.mxu0 0.0
        %482 = vmatprep.subr.mxu0 0.0
        %483 = vmatpush1.msra.mxu0 0.0
        %484 = vmatprep.subr.mxu0 0.0
        %485 = vmatpush1.msra.mxu0 0.0
        %486 = vmatprep.mubr.f32.mxu0 0.0
        %487 = vmatmul.mubr.f32.gmra.mrb[0].mxu0 %v415
        %v488 = vpop.f32.mrb[0].mxu0
        %v489 = vadd.f32 %v409, %v488
        %v490 = vpop.f32.mrb[0].mxu0
        %v491 = vadd.f32 %v409, %v490
        %492 = vdwg.mxu0
        %v493 = vtanh.pop %v489
        %v494 = vtanh.pop %v491
        %v495 = vmul.f32 %v493, 0.1
        %v496 = vmul.f32 %v494, 0.1
        %498 = vset.pattern.permute.xlu0 0
        %499 = vperm.xlu0 %498, %v401
        %v500 = vpop.permute.xlu0 %499
        %v503 = vsel %vm413, %v399, 0
        %505 = vmatprep.subr.mxu0 %v420
        %506 = vmatpush1.msra.mxu0 %v418
        %507 = vmatprep.subr.mxu0 0.0
        %508 = vmatpush1.msra.mxu0 0.0
        %509 = vmatprep.subr.mxu0 0.0
        %510 = vmatpush1.msra.mxu0 0.0
        %511 = vmatprep.subr.mxu0 0.0
        %512 = vmatpush1.msra.mxu0 0.0
        %513 = vmatprep.subr.mxu0 0.0
        %514 = vmatpush1.msra.mxu0 0.0
        %515 = vmatprep.subr.mxu0 0.0
        %516 = vmatpush1.msra.mxu0 0.0
        %517 = vmatprep.subr.mxu0 0.0
        %518 = vmatpush1.msra.mxu0 0.0
        %519 = vmatprep.subr.mxu0 0.0
        %520 = vmatpush1.msra.mxu0 0.0
        %521 = vmatprep.subr.mxu0 0.0
        %522 = vmatpush1.msra.mxu0 0.0
        %523 = vmatprep.subr.mxu0 0.0
        %524 = vmatpush1.msra.mxu0 0.0
        %525 = vmatprep.subr.mxu0 0.0
        %526 = vmatpush1.msra.mxu0 0.0
        %527 = vmatprep.subr.mxu0 0.0
        %528 = vmatpush1.msra.mxu0 0.0
        %529 = vmatprep.subr.mxu0 0.0
        %530 = vmatpush1.msra.mxu0 0.0
        %531 = vmatprep.subr.mxu0 0.0
        %532 = vmatpush1.msra.mxu0 0.0
        %533 = vmatprep.subr.mxu0 0.0
        %534 = vmatpush1.msra.mxu0 0.0
        %535 = vmatprep.subr.mxu0 0.0
        %536 = vmatpush1.msra.mxu0 0.0
        %537 = vmatprep.subr.mxu0 0.0
        %538 = vmatpush1.msra.mxu0 0.0
        %539 = vmatprep.subr.mxu0 0.0
        %540 = vmatpush1.msra.mxu0 0.0
        %541 = vmatprep.subr.mxu0 0.0
        %542 = vmatpush1.msra.mxu0 0.0
        %543 = vmatprep.subr.mxu0 0.0
        %544 = vmatpush1.msra.mxu0 0.0
        %545 = vmatprep.subr.mxu0 0.0
        %546 = vmatpush1.msra.mxu0 0.0
        %547 = vmatprep.subr.mxu0 0.0
        %548 = vmatpush1.msra.mxu0 0.0
        %549 = vmatprep.subr.mxu0 0.0
        %550 = vmatpush1.msra.mxu0 0.0
        %551 = vmatprep.subr.mxu0 0.0
        %552 = vmatpush1.msra.mxu0 0.0
        %553 = vmatprep.subr.mxu0 0.0
        %554 = vmatpush1.msra.mxu0 0.0
        %555 = vmatprep.subr.mxu0 0.0
        %556 = vmatpush1.msra.mxu0 0.0
        %557 = vmatprep.subr.mxu0 0.0
        %558 = vmatpush1.msra.mxu0 0.0
        %559 = vmatprep.subr.mxu0 0.0
        %560 = vmatpush1.msra.mxu0 0.0
        %561 = vmatprep.subr.mxu0 0.0
        %562 = vmatpush1.msra.mxu0 0.0
        %563 = vmatprep.subr.mxu0 0.0
        %564 = vmatpush1.msra.mxu0 0.0
        %565 = vmatprep.subr.mxu0 0.0
        %566 = vmatpush1.msra.mxu0 0.0
        %567 = vmatprep.subr.mxu0 0.0
        %568 = vmatpush1.msra.mxu0 0.0
        %569 = vmatprep.mubr.f32.mxu0 0.0
        %570 = vmatmul.mubr.f32.gmra.mrb[0].mxu0 %v503
        %v571 = vpop.f32.mrb[0].mxu0
        %v572 = vadd.f32 %v500, %v571
        %v573 = vpop.f32.mrb[0].mxu0
        %v574 = vadd.f32 %v500, %v573
        %575 = vdwg.mxu0
        %v576 = vtanh.pop %v572
        %v577 = vtanh.pop %v574
        %v578 = vmul.f32 %v576, 0.05
        %v579 = vmul.f32 %v577, 0.05
        %v580 = vstv %s404
        %v581 = vmul.f32 %v580, %v397
        %v582 = vstv %s405
        %v583 = vmul.f32 %v582, %v495
        %v584 = vmul.f32 %v582, %v496
        %v587 = vcombine.low %v583, %v584
        %v589 = vsub.f32 %v581, %v587
        %v590 = vmul.f32 %v578, 1.442695
        %v591 = vpow.pop %v590
        %v592 = vmul.f32 %v579, 1.442695
        %v593 = vpow.pop %v592
        %s594 = scalar_lea.vmem %s352, 16 [#allocation14]
        %v595 = vld [vmem:[%s594] sm:$0xf]
        %v596 = vunpack.c.l.bf16 %v595
        %v598 = vcombine.high %v596, %v596
        %v600 = vmul.f32 %v591, %v596
        %v601 = vmul.f32 %v593, %v598
        %v604 = vcombine.low %v600, %v601
        %v606 = vadd.f32 %v589, %v604
        %s607 = ssub.s32 8, %s402
        %s608 = sld [smem:[#allocation3 + %s607]]
        %s609 = sld [smem:[#allocation4 + %s607]]
        %v611 = vcombine.high %v606, %v606
        %v612 = vsel %vm417, %v606, 0
        %v614 = vsel %vm417, %v611, 0
        %616 = vmatprep.subr.mxu0 %v614
        %617 = vmatpush1.msra.mxu0 %v612
        %618 = vmatprep.subr.mxu0 0.0
        %619 = vmatpush1.msra.mxu0 0.0
        %620 = vmatprep.subr.mxu0 0.0
        %621 = vmatpush1.msra.mxu0 0.0
        %622 = vmatprep.subr.mxu0 0.0
        %623 = vmatpush1.msra.mxu0 0.0
        %624 = vmatprep.subr.mxu0 0.0
        %625 = vmatpush1.msra.mxu0 0.0
        %626 = vmatprep.subr.mxu0 0.0
        %627 = vmatpush1.msra.mxu0 0.0
        %628 = vmatprep.subr.mxu0 0.0
        %629 = vmatpush1.msra.mxu0 0.0
        %630 = vmatprep.subr.mxu0 0.0
        %631 = vmatpush1.msra.mxu0 0.0
        %632 = vmatprep.subr.mxu0 0.0
        %633 = vmatpush1.msra.mxu0 0.0
        %634 = vmatprep.subr.mxu0 0.0
        %635 = vmatpush1.msra.mxu0 0.0
        %636 = vmatprep.subr.mxu0 0.0
        %637 = vmatpush1.msra.mxu0 0.0
        %638 = vmatprep.subr.mxu0 0.0
        %639 = vmatpush1.msra.mxu0 0.0
        %640 = vmatprep.subr.mxu0 0.0
        %641 = vmatpush1.msra.mxu0 0.0
        %642 = vmatprep.subr.mxu0 0.0
        %643 = vmatpush1.msra.mxu0 0.0
        %644 = vmatprep.subr.mxu0 0.0
        %645 = vmatpush1.msra.mxu0 0.0
        %646 = vmatprep.subr.mxu0 0.0
        %647 = vmatpush1.msra.mxu0 0.0
        %648 = vmatprep.subr.mxu0 0.0
        %649 = vmatpush1.msra.mxu0 0.0
        %650 = vmatprep.subr.mxu0 0.0
        %651 = vmatpush1.msra.mxu0 0.0
        %652 = vmatprep.subr.mxu0 0.0
        %653 = vmatpush1.msra.mxu0 0.0
        %654 = vmatprep.subr.mxu0 0.0
        %655 = vmatpush1.msra.mxu0 0.0
        %656 = vmatprep.subr.mxu0 0.0
        %657 = vmatpush1.msra.mxu0 0.0
        %658 = vmatprep.subr.mxu0 0.0
        %659 = vmatpush1.msra.mxu0 0.0
        %660 = vmatprep.subr.mxu0 0.0
        %661 = vmatpush1.msra.mxu0 0.0
        %662 = vmatprep.subr.mxu0 0.0
        %663 = vmatpush1.msra.mxu0 0.0
        %664 = vmatprep.subr.mxu0 0.0
        %665 = vmatpush1.msra.mxu0 0.0
        %666 = vmatprep.subr.mxu0 0.0
        %667 = vmatpush1.msra.mxu0 0.0
        %668 = vmatprep.subr.mxu0 0.0
        %669 = vmatpush1.msra.mxu0 0.0
        %670 = vmatprep.subr.mxu0 0.0
        %671 = vmatpush1.msra.mxu0 0.0
        %672 = vmatprep.subr.mxu0 0.0
        %673 = vmatpush1.msra.mxu0 0.0
        %674 = vmatprep.subr.mxu0 0.0
        %675 = vmatpush1.msra.mxu0 0.0
        %676 = vmatprep.subr.mxu0 0.0
        %677 = vmatpush1.msra.mxu0 0.0
        %678 = vmatprep.subr.mxu0 0.0
        %679 = vmatpush1.msra.mxu0 0.0
        %680 = vmatprep.mubr.f32.mxu0 0.0
        %681 = vmatmul.mubr.f32.gmra.mrb[0].mxu0 %v415
        %v682 = vpop.f32.mrb[0].mxu0
        %v683 = vadd.f32 %v409, %v682
        %v684 = vpop.f32.mrb[0].mxu0
        %v685 = vadd.f32 %v409, %v684
        %686 = vdwg.mxu0
        %v687 = vtanh.pop %v683
        %v688 = vtanh.pop %v685
        %v689 = vmul.f32 %v687, 0.1
        %v690 = vmul.f32 %v688, 0.1
        %691 = vmatprep.subr.mxu0 %v614
        %692 = vmatpush1.msra.mxu0 %v612
        %693 = vmatprep.subr.mxu0 0.0
        %694 = vmatpush1.msra.mxu0 0.0
        %695 = vmatprep.subr.mxu0 0.0
        %696 = vmatpush1.msra.mxu0 0.0
        %697 = vmatprep.subr.mxu0 0.0
        %698 = vmatpush1.msra.mxu0 0.0
        %699 = vmatprep.subr.mxu0 0.0
        %700 = vmatpush1.msra.mxu0 0.0
        %701 = vmatprep.subr.mxu0 0.0
        %702 = vmatpush1.msra.mxu0 0.0
        %703 = vmatprep.subr.mxu0 0.0
        %704 = vmatpush1.msra.mxu0 0.0
        %705 = vmatprep.subr.mxu0 0.0
        %706 = vmatpush1.msra.mxu0 0.0
        %707 = vmatprep.subr.mxu0 0.0
        %708 = vmatpush1.msra.mxu0 0.0
        %709 = vmatprep.subr.mxu0 0.0
        %710 = vmatpush1.msra.mxu0 0.0
        %711 = vmatprep.subr.mxu0 0.0
        %712 = vmatpush1.msra.mxu0 0.0
        %713 = vmatprep.subr.mxu0 0.0
        %714 = vmatpush1.msra.mxu0 0.0
        %715 = vmatprep.subr.mxu0 0.0
        %716 = vmatpush1.msra.mxu0 0.0
        %717 = vmatprep.subr.mxu0 0.0
        %718 = vmatpush1.msra.mxu0 0.0
        %719 = vmatprep.subr.mxu0 0.0
        %720 = vmatpush1.msra.mxu0 0.0
        %721 = vmatprep.subr.mxu0 0.0
        %722 = vmatpush1.msra.mxu0 0.0
        %723 = vmatprep.subr.mxu0 0.0
        %724 = vmatpush1.msra.mxu0 0.0
        %725 = vmatprep.subr.mxu0 0.0
        %726 = vmatpush1.msra.mxu0 0.0
        %727 = vmatprep.subr.mxu0 0.0
        %728 = vmatpush1.msra.mxu0 0.0
        %729 = vmatprep.subr.mxu0 0.0
        %730 = vmatpush1.msra.mxu0 0.0
        %731 = vmatprep.subr.mxu0 0.0
        %732 = vmatpush1.msra.mxu0 0.0
        %733 = vmatprep.subr.mxu0 0.0
        %734 = vmatpush1.msra.mxu0 0.0
        %735 = vmatprep.subr.mxu0 0.0
        %736 = vmatpush1.msra.mxu0 0.0
        %737 = vmatprep.subr.mxu0 0.0
        %738 = vmatpush1.msra.mxu0 0.0
        %739 = vmatprep.subr.mxu0 0.0
        %740 = vmatpush1.msra.mxu0 0.0
        %741 = vmatprep.subr.mxu0 0.0
        %742 = vmatpush1.msra.mxu0 0.0
        %743 = vmatprep.subr.mxu0 0.0
        %744 = vmatpush1.msra.mxu0 0.0
        %745 = vmatprep.subr.mxu0 0.0
        %746 = vmatpush1.msra.mxu0 0.0
        %747 = vmatprep.subr.mxu0 0.0
        %748 = vmatpush1.msra.mxu0 0.0
        %749 = vmatprep.subr.mxu0 0.0
        %750 = vmatpush1.msra.mxu0 0.0
        %751 = vmatprep.subr.mxu0 0.0
        %752 = vmatpush1.msra.mxu0 0.0
        %753 = vmatprep.subr.mxu0 0.0
        %754 = vmatpush1.msra.mxu0 0.0
        %755 = vmatprep.mubr.f32.mxu0 0.0
        %756 = vmatmul.mubr.f32.gmra.mrb[0].mxu0 %v503
        %v757 = vpop.f32.mrb[0].mxu0
        %v758 = vadd.f32 %v500, %v757
        %v759 = vpop.f32.mrb[0].mxu0
        %v760 = vadd.f32 %v500, %v759
        %761 = vdwg.mxu0
        %v762 = vtanh.pop %v758
        %v763 = vtanh.pop %v760
        %v764 = vmul.f32 %v762, 0.05
        %v765 = vmul.f32 %v763, 0.05
        %v766 = vstv %s608
        %v767 = vmul.f32 %v766, %v606
        %v768 = vstv %s609
        %v769 = vmul.f32 %v768, %v689
        %v770 = vmul.f32 %v768, %v690
        %v773 = vcombine.low %v769, %v770
        %v775 = vsub.f32 %v767, %v773
        %v776 = vmul.f32 %v764, 1.442695
        %v777 = vpow.pop %v776
        %v778 = vmul.f32 %v765, 1.442695
        %v779 = vpow.pop %v778
        %s780 = scalar_lea.vmem %s352, 12 [#allocation14]
        %v781 = vld [vmem:[%s780] sm:$0xf]
        %v782 = vunpack.c.l.bf16 %v781
        %v784 = vcombine.high %v782, %v782
        %v786 = vmul.f32 %v777, %v782
        %v787 = vmul.f32 %v779, %v784
        %v790 = vcombine.low %v786, %v787
        %v792 = vadd.f32 %v775, %v790
        %s793 = ssub.s32 7, %s402
        %s794 = sld [smem:[#allocation3 + %s793]]
        %s795 = sld [smem:[#allocation4 + %s793]]
        %v797 = vcombine.high %v792, %v792
        %v798 = vsel %vm417, %v792, 0
        %v800 = vsel %vm417, %v797, 0
        %802 = vmatprep.subr.mxu0 %v800
        %803 = vmatpush1.msra.mxu0 %v798
        %804 = vmatprep.subr.mxu0 0.0
        %805 = vmatpush1.msra.mxu0 0.0
        %806 = vmatprep.subr.mxu0 0.0
        %807 = vmatpush1.msra.mxu0 0.0
        %808 = vmatprep.subr.mxu0 0.0
        %809 = vmatpush1.msra.mxu0 0.0
        %810 = vmatprep.subr.mxu0 0.0
        %811 = vmatpush1.msra.mxu0 0.0
        %812 = vmatprep.subr.mxu0 0.0
        %813 = vmatpush1.msra.mxu0 0.0
        %814 = vmatprep.subr.mxu0 0.0
        %815 = vmatpush1.msra.mxu0 0.0
        %816 = vmatprep.subr.mxu0 0.0
        %817 = vmatpush1.msra.mxu0 0.0
        %818 = vmatprep.subr.mxu0 0.0
        %819 = vmatpush1.msra.mxu0 0.0
        %820 = vmatprep.subr.mxu0 0.0
        %821 = vmatpush1.msra.mxu0 0.0
        %822 = vmatprep.subr.mxu0 0.0
        %823 = vmatpush1.msra.mxu0 0.0
        %824 = vmatprep.subr.mxu0 0.0
        %825 = vmatpush1.msra.mxu0 0.0
        %826 = vmatprep.subr.mxu0 0.0
        %827 = vmatpush1.msra.mxu0 0.0
        %828 = vmatprep.subr.mxu0 0.0
        %829 = vmatpush1.msra.mxu0 0.0
        %830 = vmatprep.subr.mxu0 0.0
        %831 = vmatpush1.msra.mxu0 0.0
        %832 = vmatprep.subr.mxu0 0.0
        %833 = vmatpush1.msra.mxu0 0.0
        %834 = vmatprep.subr.mxu0 0.0
        %835 = vmatpush1.msra.mxu0 0.0
        %836 = vmatprep.subr.mxu0 0.0
        %837 = vmatpush1.msra.mxu0 0.0
        %838 = vmatprep.subr.mxu0 0.0
        %839 = vmatpush1.msra.mxu0 0.0
        %840 = vmatprep.subr.mxu0 0.0
        %841 = vmatpush1.msra.mxu0 0.0
        %842 = vmatprep.subr.mxu0 0.0
        %843 = vmatpush1.msra.mxu0 0.0
        %844 = vmatprep.subr.mxu0 0.0
        %845 = vmatpush1.msra.mxu0 0.0
        %846 = vmatprep.subr.mxu0 0.0
        %847 = vmatpush1.msra.mxu0 0.0
        %848 = vmatprep.subr.mxu0 0.0
        %849 = vmatpush1.msra.mxu0 0.0
        %850 = vmatprep.subr.mxu0 0.0
        %851 = vmatpush1.msra.mxu0 0.0
        %852 = vmatprep.subr.mxu0 0.0
        %853 = vmatpush1.msra.mxu0 0.0
        %854 = vmatprep.subr.mxu0 0.0
        %855 = vmatpush1.msra.mxu0 0.0
        %856 = vmatprep.subr.mxu0 0.0
        %857 = vmatpush1.msra.mxu0 0.0
        %858 = vmatprep.subr.mxu0 0.0
        %859 = vmatpush1.msra.mxu0 0.0
        %860 = vmatprep.subr.mxu0 0.0
        %861 = vmatpush1.msra.mxu0 0.0
        %862 = vmatprep.subr.mxu0 0.0
        %863 = vmatpush1.msra.mxu0 0.0
        %864 = vmatprep.subr.mxu0 0.0
        %865 = vmatpush1.msra.mxu0 0.0
        %866 = vmatprep.mubr.f32.mxu0 0.0
        %867 = vmatmul.mubr.f32.gmra.mrb[0].mxu0 %v415
        %v868 = vpop.f32.mrb[0].mxu0
        %v869 = vadd.f32 %v409, %v868
        %v870 = vpop.f32.mrb[0].mxu0
        %v871 = vadd.f32 %v409, %v870
        %872 = vdwg.mxu0
        %v873 = vtanh.pop %v869
        %v874 = vtanh.pop %v871
        %v875 = vmul.f32 %v873, 0.1
        %v876 = vmul.f32 %v874, 0.1
        %877 = vmatprep.subr.mxu0 %v800
        %878 = vmatpush1.msra.mxu0 %v798
        %879 = vmatprep.subr.mxu0 0.0
        %880 = vmatpush1.msra.mxu0 0.0
        %881 = vmatprep.subr.mxu0 0.0
        %882 = vmatpush1.msra.mxu0 0.0
        %883 = vmatprep.subr.mxu0 0.0
        %884 = vmatpush1.msra.mxu0 0.0
        %885 = vmatprep.subr.mxu0 0.0
        %886 = vmatpush1.msra.mxu0 0.0
        %887 = vmatprep.subr.mxu0 0.0
        %888 = vmatpush1.msra.mxu0 0.0
        %889 = vmatprep.subr.mxu0 0.0
        %890 = vmatpush1.msra.mxu0 0.0
        %891 = vmatprep.subr.mxu0 0.0
        %892 = vmatpush1.msra.mxu0 0.0
        %893 = vmatprep.subr.mxu0 0.0
        %894 = vmatpush1.msra.mxu0 0.0
        %895 = vmatprep.subr.mxu0 0.0
        %896 = vmatpush1.msra.mxu0 0.0
        %897 = vmatprep.subr.mxu0 0.0
        %898 = vmatpush1.msra.mxu0 0.0
        %899 = vmatprep.subr.mxu0 0.0
        %900 = vmatpush1.msra.mxu0 0.0
        %901 = vmatprep.subr.mxu0 0.0
        %902 = vmatpush1.msra.mxu0 0.0
        %903 = vmatprep.subr.mxu0 0.0
        %904 = vmatpush1.msra.mxu0 0.0
        %905 = vmatprep.subr.mxu0 0.0
        %906 = vmatpush1.msra.mxu0 0.0
        %907 = vmatprep.subr.mxu0 0.0
        %908 = vmatpush1.msra.mxu0 0.0
        %909 = vmatprep.subr.mxu0 0.0
        %910 = vmatpush1.msra.mxu0 0.0
        %911 = vmatprep.subr.mxu0 0.0
        %912 = vmatpush1.msra.mxu0 0.0
        %913 = vmatprep.subr.mxu0 0.0
        %914 = vmatpush1.msra.mxu0 0.0
        %915 = vmatprep.subr.mxu0 0.0
        %916 = vmatpush1.msra.mxu0 0.0
        %917 = vmatprep.subr.mxu0 0.0
        %918 = vmatpush1.msra.mxu0 0.0
        %919 = vmatprep.subr.mxu0 0.0
        %920 = vmatpush1.msra.mxu0 0.0
        %921 = vmatprep.subr.mxu0 0.0
        %922 = vmatpush1.msra.mxu0 0.0
        %923 = vmatprep.subr.mxu0 0.0
        %924 = vmatpush1.msra.mxu0 0.0
        %925 = vmatprep.subr.mxu0 0.0
        %926 = vmatpush1.msra.mxu0 0.0
        %927 = vmatprep.subr.mxu0 0.0
        %928 = vmatpush1.msra.mxu0 0.0
        %929 = vmatprep.subr.mxu0 0.0
        %930 = vmatpush1.msra.mxu0 0.0
        %931 = vmatprep.subr.mxu0 0.0
        %932 = vmatpush1.msra.mxu0 0.0
        %933 = vmatprep.subr.mxu0 0.0
        %934 = vmatpush1.msra.mxu0 0.0
        %935 = vmatprep.subr.mxu0 0.0
        %936 = vmatpush1.msra.mxu0 0.0
        %937 = vmatprep.subr.mxu0 0.0
        %938 = vmatpush1.msra.mxu0 0.0
        %939 = vmatprep.subr.mxu0 0.0
        %940 = vmatpush1.msra.mxu0 0.0
        %941 = vmatprep.mubr.f32.mxu0 0.0
        %942 = vmatmul.mubr.f32.gmra.mrb[0].mxu0 %v503
        %v943 = vpop.f32.mrb[0].mxu0
        %v944 = vadd.f32 %v500, %v943
        %v945 = vpop.f32.mrb[0].mxu0
        %v946 = vadd.f32 %v500, %v945
        %947 = vdwg.mxu0
        %v948 = vtanh.pop %v944
        %v949 = vtanh.pop %v946
        %v950 = vmul.f32 %v948, 0.05
        %v951 = vmul.f32 %v949, 0.05
        %v952 = vstv %s794
        %v953 = vmul.f32 %v952, %v792
        %v954 = vstv %s795
        %v955 = vmul.f32 %v954, %v875
        %v956 = vmul.f32 %v954, %v876
        %v959 = vcombine.low %v955, %v956
        %v961 = vsub.f32 %v953, %v959
        %v962 = vmul.f32 %v950, 1.442695
        %v963 = vpow.pop %v962
        %v964 = vmul.f32 %v951, 1.442695
        %v965 = vpow.pop %v964
        %s966 = scalar_lea.vmem %s352, 8 [#allocation14]
        %v967 = vld [vmem:[%s966] sm:$0xf]
        %v968 = vunpack.c.l.bf16 %v967
        %v970 = vcombine.high %v968, %v968
        %v972 = vmul.f32 %v963, %v968
        %v973 = vmul.f32 %v965, %v970
        %v976 = vcombine.low %v972, %v973
        %v978 = vadd.f32 %v961, %v976
        %s979 = ssub.s32 6, %s402
        %s980 = sld [smem:[#allocation3 + %s979]]
        %s981 = sld [smem:[#allocation4 + %s979]]
        %v983 = vcombine.high %v978, %v978
        %v984 = vsel %vm417, %v978, 0
        %v986 = vsel %vm417, %v983, 0
        %988 = vmatprep.subr.mxu0 %v986
        %989 = vmatpush1.msra.mxu0 %v984
        %990 = vmatprep.subr.mxu0 0.0
        %991 = vmatpush1.msra.mxu0 0.0
        %992 = vmatprep.subr.mxu0 0.0
        %993 = vmatpush1.msra.mxu0 0.0
        %994 = vmatprep.subr.mxu0 0.0
        %995 = vmatpush1.msra.mxu0 0.0
        %996 = vmatprep.subr.mxu0 0.0
        %997 = vmatpush1.msra.mxu0 0.0
        %998 = vmatprep.subr.mxu0 0.0
        %999 = vmatpush1.msra.mxu0 0.0
        %1000 = vmatprep.subr.mxu0 0.0
        %1001 = vmatpush1.msra.mxu0 0.0
        %1002 = vmatprep.subr.mxu0 0.0
        %1003 = vmatpush1.msra.mxu0 0.0
        %1004 = vmatprep.subr.mxu0 0.0
        %1005 = vmatpush1.msra.mxu0 0.0
        %1006 = vmatprep.subr.mxu0 0.0
        %1007 = vmatpush1.msra.mxu0 0.0
        %1008 = vmatprep.subr.mxu0 0.0
        %1009 = vmatpush1.msra.mxu0 0.0
        %1010 = vmatprep.subr.mxu0 0.0
        %1011 = vmatpush1.msra.mxu0 0.0
        %1012 = vmatprep.subr.mxu0 0.0
        %1013 = vmatpush1.msra.mxu0 0.0
        %1014 = vmatprep.subr.mxu0 0.0
        %1015 = vmatpush1.msra.mxu0 0.0
        %1016 = vmatprep.subr.mxu0 0.0
        %1017 = vmatpush1.msra.mxu0 0.0
        %1018 = vmatprep.subr.mxu0 0.0
        %1019 = vmatpush1.msra.mxu0 0.0
        %1020 = vmatprep.subr.mxu0 0.0
        %1021 = vmatpush1.msra.mxu0 0.0
        %1022 = vmatprep.subr.mxu0 0.0
        %1023 = vmatpush1.msra.mxu0 0.0
        %1024 = vmatprep.subr.mxu0 0.0
        %1025 = vmatpush1.msra.mxu0 0.0
        %1026 = vmatprep.subr.mxu0 0.0
        %1027 = vmatpush1.msra.mxu0 0.0
        %1028 = vmatprep.subr.mxu0 0.0
        %1029 = vmatpush1.msra.mxu0 0.0
        %1030 = vmatprep.subr.mxu0 0.0
        %1031 = vmatpush1.msra.mxu0 0.0
        %1032 = vmatprep.subr.mxu0 0.0
        %1033 = vmatpush1.msra.mxu0 0.0
        %1034 = vmatprep.subr.mxu0 0.0
        %1035 = vmatpush1.msra.mxu0 0.0
        %1036 = vmatprep.subr.mxu0 0.0
        %1037 = vmatpush1.msra.mxu0 0.0
        %1038 = vmatprep.subr.mxu0 0.0
        %1039 = vmatpush1.msra.mxu0 0.0
        %1040 = vmatprep.subr.mxu0 0.0
        %1041 = vmatpush1.msra.mxu0 0.0
        %1042 = vmatprep.subr.mxu0 0.0
        %1043 = vmatpush1.msra.mxu0 0.0
        %1044 = vmatprep.subr.mxu0 0.0
        %1045 = vmatpush1.msra.mxu0 0.0
        %1046 = vmatprep.subr.mxu0 0.0
        %1047 = vmatpush1.msra.mxu0 0.0
        %1048 = vmatprep.subr.mxu0 0.0
        %1049 = vmatpush1.msra.mxu0 0.0
        %1050 = vmatprep.subr.mxu0 0.0
        %1051 = vmatpush1.msra.mxu0 0.0
        %1052 = vmatprep.mubr.f32.mxu0 0.0
        %1053 = vmatmul.mubr.f32.gmra.mrb[0].mxu0 %v415
        %v1054 = vpop.f32.mrb[0].mxu0
        %v1055 = vadd.f32 %v409, %v1054
        %v1056 = vpop.f32.mrb[0].mxu0
        %v1057 = vadd.f32 %v409, %v1056
        %1058 = vdwg.mxu0
        %v1059 = vtanh.pop %v1055
        %v1060 = vtanh.pop %v1057
        %v1061 = vmul.f32 %v1059, 0.1
        %v1062 = vmul.f32 %v1060, 0.1
        %1063 = vmatprep.subr.mxu0 %v986
        %1064 = vmatpush1.msra.mxu0 %v984
        %1065 = vmatprep.subr.mxu0 0.0
        %1066 = vmatpush1.msra.mxu0 0.0
        %1067 = vmatprep.subr.mxu0 0.0
        %1068 = vmatpush1.msra.mxu0 0.0
        %1069 = vmatprep.subr.mxu0 0.0
        %1070 = vmatpush1.msra.mxu0 0.0
        %1071 = vmatprep.subr.mxu0 0.0
        %1072 = vmatpush1.msra.mxu0 0.0
        %1073 = vmatprep.subr.mxu0 0.0
        %1074 = vmatpush1.msra.mxu0 0.0
        %1075 = vmatprep.subr.mxu0 0.0
        %1076 = vmatpush1.msra.mxu0 0.0
        %1077 = vmatprep.subr.mxu0 0.0
        %1078 = vmatpush1.msra.mxu0 0.0
        %1079 = vmatprep.subr.mxu0 0.0
        %1080 = vmatpush1.msra.mxu0 0.0
        %1081 = vmatprep.subr.mxu0 0.0
        %1082 = vmatpush1.msra.mxu0 0.0
        %1083 = vmatprep.subr.mxu0 0.0
        %1084 = vmatpush1.msra.mxu0 0.0
        %1085 = vmatprep.subr.mxu0 0.0
        %1086 = vmatpush1.msra.mxu0 0.0
        %1087 = vmatprep.subr.mxu0 0.0
        %1088 = vmatpush1.msra.mxu0 0.0
        %1089 = vmatprep.subr.mxu0 0.0
        %1090 = vmatpush1.msra.mxu0 0.0
        %1091 = vmatprep.subr.mxu0 0.0
        %1092 = vmatpush1.msra.mxu0 0.0
        %1093 = vmatprep.subr.mxu0 0.0
        %1094 = vmatpush1.msra.mxu0 0.0
        %1095 = vmatprep.subr.mxu0 0.0
        %1096 = vmatpush1.msra.mxu0 0.0
        %1097 = vmatprep.subr.mxu0 0.0
        %1098 = vmatpush1.msra.mxu0 0.0
        %1099 = vmatprep.subr.mxu0 0.0
        %1100 = vmatpush1.msra.mxu0 0.0
        %1101 = vmatprep.subr.mxu0 0.0
        %1102 = vmatpush1.msra.mxu0 0.0
        %1103 = vmatprep.subr.mxu0 0.0
        %1104 = vmatpush1.msra.mxu0 0.0
        %1105 = vmatprep.subr.mxu0 0.0
        %1106 = vmatpush1.msra.mxu0 0.0
        %1107 = vmatprep.subr.mxu0 0.0
        %1108 = vmatpush1.msra.mxu0 0.0
        %1109 = vmatprep.subr.mxu0 0.0
        %1110 = vmatpush1.msra.mxu0 0.0
        %1111 = vmatprep.subr.mxu0 0.0
        %1112 = vmatpush1.msra.mxu0 0.0
        %1113 = vmatprep.subr.mxu0 0.0
        %1114 = vmatpush1.msra.mxu0 0.0
        %1115 = vmatprep.subr.mxu0 0.0
        %1116 = vmatpush1.msra.mxu0 0.0
        %1117 = vmatprep.subr.mxu0 0.0
        %1118 = vmatpush1.msra.mxu0 0.0
        %1119 = vmatprep.subr.mxu0 0.0
        %1120 = vmatpush1.msra.mxu0 0.0
        %1121 = vmatprep.subr.mxu0 0.0
        %1122 = vmatpush1.msra.mxu0 0.0
        %1123 = vmatprep.subr.mxu0 0.0
        %1124 = vmatpush1.msra.mxu0 0.0
        %1125 = vmatprep.subr.mxu0 0.0
        %1126 = vmatpush1.msra.mxu0 0.0
        %1127 = vmatprep.mubr.f32.mxu0 0.0
        %1128 = vmatmul.mubr.f32.gmra.mrb[0].mxu0 %v503
        %v1129 = vpop.f32.mrb[0].mxu0
        %v1130 = vadd.f32 %v500, %v1129
        %v1131 = vpop.f32.mrb[0].mxu0
        %v1132 = vadd.f32 %v500, %v1131
        %1133 = vdwg.mxu0
        %v1134 = vtanh.pop %v1130
        %v1135 = vtanh.pop %v1132
        %v1136 = vmul.f32 %v1134, 0.05
        %v1137 = vmul.f32 %v1135, 0.05
        %v1138 = vstv %s980
        %v1139 = vmul.f32 %v1138, %v978
        %v1140 = vstv %s981
        %v1141 = vmul.f32 %v1140, %v1061
        %v1142 = vmul.f32 %v1140, %v1062
        %v1145 = vcombine.low %v1141, %v1142
        %v1147 = vsub.f32 %v1139, %v1145
        %v1148 = vmul.f32 %v1136, 1.442695
        %v1149 = vpow.pop %v1148
        %v1150 = vmul.f32 %v1137, 1.442695
        %v1151 = vpow.pop %v1150
        %s1152 = scalar_lea.vmem %s352, 4 [#allocation14]
        %v1153 = vld [vmem:[%s1152] sm:$0xf]
        %v1154 = vunpack.c.l.bf16 %v1153
        %v1156 = vcombine.high %v1154, %v1154
        %v1158 = vmul.f32 %v1149, %v1154
        %v1159 = vmul.f32 %v1151, %v1156
        %v1162 = vcombine.low %v1158, %v1159
        %v1164 = vadd.f32 %v1147, %v1162
        %s1165 = ssub.s32 5, %s402
        %s1166 = sld [smem:[#allocation3 + %s1165]]
        %s1167 = sld [smem:[#allocation4 + %s1165]]
        %v1169 = vcombine.high %v1164, %v1164
        %v1170 = vsel %vm417, %v1164, 0
        %v1172 = vsel %vm417, %v1169, 0
        %1174 = vmatprep.subr.mxu0 %v1172
        %1175 = vmatpush1.msra.mxu0 %v1170
        %1176 = vmatprep.subr.mxu0 0.0
        %1177 = vmatpush1.msra.mxu0 0.0
        %1178 = vmatprep.subr.mxu0 0.0
        %1179 = vmatpush1.msra.mxu0 0.0
        %1180 = vmatprep.subr.mxu0 0.0
        %1181 = vmatpush1.msra.mxu0 0.0
        %1182 = vmatprep.subr.mxu0 0.0
        %1183 = vmatpush1.msra.mxu0 0.0
        %1184 = vmatprep.subr.mxu0 0.0
        %1185 = vmatpush1.msra.mxu0 0.0
        %1186 = vmatprep.subr.mxu0 0.0
        %1187 = vmatpush1.msra.mxu0 0.0
        %1188 = vmatprep.subr.mxu0 0.0
        %1189 = vmatpush1.msra.mxu0 0.0
        %1190 = vmatprep.subr.mxu0 0.0
        %1191 = vmatpush1.msra.mxu0 0.0
        %1192 = vmatprep.subr.mxu0 0.0
        %1193 = vmatpush1.msra.mxu0 0.0
        %1194 = vmatprep.subr.mxu0 0.0
        %1195 = vmatpush1.msra.mxu0 0.0
        %1196 = vmatprep.subr.mxu0 0.0
        %1197 = vmatpush1.msra.mxu0 0.0
        %1198 = vmatprep.subr.mxu0 0.0
        %1199 = vmatpush1.msra.mxu0 0.0
        %1200 = vmatprep.subr.mxu0 0.0
        %1201 = vmatpush1.msra.mxu0 0.0
        %1202 = vmatprep.subr.mxu0 0.0
        %1203 = vmatpush1.msra.mxu0 0.0
        %1204 = vmatprep.subr.mxu0 0.0
        %1205 = vmatpush1.msra.mxu0 0.0
        %1206 = vmatprep.subr.mxu0 0.0
        %1207 = vmatpush1.msra.mxu0 0.0
        %1208 = vmatprep.subr.mxu0 0.0
        %1209 = vmatpush1.msra.mxu0 0.0
        %1210 = vmatprep.subr.mxu0 0.0
        %1211 = vmatpush1.msra.mxu0 0.0
        %1212 = vmatprep.subr.mxu0 0.0
        %1213 = vmatpush1.msra.mxu0 0.0
        %1214 = vmatprep.subr.mxu0 0.0
        %1215 = vmatpush1.msra.mxu0 0.0
        %1216 = vmatprep.subr.mxu0 0.0
        %1217 = vmatpush1.msra.mxu0 0.0
        %1218 = vmatprep.subr.mxu0 0.0
        %1219 = vmatpush1.msra.mxu0 0.0
        %1220 = vmatprep.subr.mxu0 0.0
        %1221 = vmatpush1.msra.mxu0 0.0
        %1222 = vmatprep.subr.mxu0 0.0
        %1223 = vmatpush1.msra.mxu0 0.0
        %1224 = vmatprep.subr.mxu0 0.0
        %1225 = vmatpush1.msra.mxu0 0.0
        %1226 = vmatprep.subr.mxu0 0.0
        %1227 = vmatpush1.msra.mxu0 0.0
        %1228 = vmatprep.subr.mxu0 0.0
        %1229 = vmatpush1.msra.mxu0 0.0
        %1230 = vmatprep.subr.mxu0 0.0
        %1231 = vmatpush1.msra.mxu0 0.0
        %1232 = vmatprep.subr.mxu0 0.0
        %1233 = vmatpush1.msra.mxu0 0.0
        %1234 = vmatprep.subr.mxu0 0.0
        %1235 = vmatpush1.msra.mxu0 0.0
        %1236 = vmatprep.subr.mxu0 0.0
        %1237 = vmatpush1.msra.mxu0 0.0
        %1238 = vmatprep.mubr.f32.mxu0 0.0
        %1239 = vmatmul.mubr.f32.gmra.mrb[0].mxu0 %v415
        %v1240 = vpop.f32.mrb[0].mxu0
        %v1241 = vadd.f32 %v409, %v1240
        %v1242 = vpop.f32.mrb[0].mxu0
        %v1243 = vadd.f32 %v409, %v1242
        %1244 = vdwg.mxu0
        %v1245 = vtanh.pop %v1241
        %v1246 = vtanh.pop %v1243
        %v1247 = vmul.f32 %v1245, 0.1
        %v1248 = vmul.f32 %v1246, 0.1
        %1249 = vmatprep.subr.mxu0 %v1172
        %1250 = vmatpush1.msra.mxu0 %v1170
        %1251 = vmatprep.subr.mxu0 0.0
        %1252 = vmatpush1.msra.mxu0 0.0
        %1253 = vmatprep.subr.mxu0 0.0
        %1254 = vmatpush1.msra.mxu0 0.0
        %1255 = vmatprep.subr.mxu0 0.0
        %1256 = vmatpush1.msra.mxu0 0.0
        %1257 = vmatprep.subr.mxu0 0.0
        %1258 = vmatpush1.msra.mxu0 0.0
        %1259 = vmatprep.subr.mxu0 0.0
        %1260 = vmatpush1.msra.mxu0 0.0
        %1261 = vmatprep.subr.mxu0 0.0
        %1262 = vmatpush1.msra.mxu0 0.0
        %1263 = vmatprep.subr.mxu0 0.0
        %1264 = vmatpush1.msra.mxu0 0.0
        %1265 = vmatprep.subr.mxu0 0.0
        %1266 = vmatpush1.msra.mxu0 0.0
        %1267 = vmatprep.subr.mxu0 0.0
        %1268 = vmatpush1.msra.mxu0 0.0
        %1269 = vmatprep.subr.mxu0 0.0
        %1270 = vmatpush1.msra.mxu0 0.0
        %1271 = vmatprep.subr.mxu0 0.0
        %1272 = vmatpush1.msra.mxu0 0.0
        %1273 = vmatprep.subr.mxu0 0.0
        %1274 = vmatpush1.msra.mxu0 0.0
        %1275 = vmatprep.subr.mxu0 0.0
        %1276 = vmatpush1.msra.mxu0 0.0
        %1277 = vmatprep.subr.mxu0 0.0
        %1278 = vmatpush1.msra.mxu0 0.0
        %1279 = vmatprep.subr.mxu0 0.0
        %1280 = vmatpush1.msra.mxu0 0.0
        %1281 = vmatprep.subr.mxu0 0.0
        %1282 = vmatpush1.msra.mxu0 0.0
        %1283 = vmatprep.subr.mxu0 0.0
        %1284 = vmatpush1.msra.mxu0 0.0
        %1285 = vmatprep.subr.mxu0 0.0
        %1286 = vmatpush1.msra.mxu0 0.0
        %1287 = vmatprep.subr.mxu0 0.0
        %1288 = vmatpush1.msra.mxu0 0.0
        %1289 = vmatprep.subr.mxu0 0.0
        %1290 = vmatpush1.msra.mxu0 0.0
        %1291 = vmatprep.subr.mxu0 0.0
        %1292 = vmatpush1.msra.mxu0 0.0
        %1293 = vmatprep.subr.mxu0 0.0
        %1294 = vmatpush1.msra.mxu0 0.0
        %1295 = vmatprep.subr.mxu0 0.0
        %1296 = vmatpush1.msra.mxu0 0.0
        %1297 = vmatprep.subr.mxu0 0.0
        %1298 = vmatpush1.msra.mxu0 0.0
        %1299 = vmatprep.subr.mxu0 0.0
        %1300 = vmatpush1.msra.mxu0 0.0
        %1301 = vmatprep.subr.mxu0 0.0
        %1302 = vmatpush1.msra.mxu0 0.0
        %1303 = vmatprep.subr.mxu0 0.0
        %1304 = vmatpush1.msra.mxu0 0.0
        %1305 = vmatprep.subr.mxu0 0.0
        %1306 = vmatpush1.msra.mxu0 0.0
        %1307 = vmatprep.subr.mxu0 0.0
        %1308 = vmatpush1.msra.mxu0 0.0
        %1309 = vmatprep.subr.mxu0 0.0
        %1310 = vmatpush1.msra.mxu0 0.0
        %1311 = vmatprep.subr.mxu0 0.0
        %1312 = vmatpush1.msra.mxu0 0.0
        %1313 = vmatprep.mubr.f32.mxu0 0.0
        %1314 = vmatmul.mubr.f32.gmra.mrb[0].mxu0 %v503
        %v1315 = vpop.f32.mrb[0].mxu0
        %v1316 = vadd.f32 %v500, %v1315
        %v1317 = vpop.f32.mrb[0].mxu0
        %v1318 = vadd.f32 %v500, %v1317
        %1319 = vdwg.mxu0
        %v1320 = vtanh.pop %v1316
        %v1321 = vtanh.pop %v1318
        %v1322 = vmul.f32 %v1320, 0.05
        %v1323 = vmul.f32 %v1321, 0.05
        %v1324 = vstv %s1166
        %v1325 = vmul.f32 %v1324, %v1164
        %v1326 = vstv %s1167
        %v1327 = vmul.f32 %v1326, %v1247
        %v1328 = vmul.f32 %v1326, %v1248
        %v1331 = vcombine.low %v1327, %v1328
        %v1333 = vsub.f32 %v1325, %v1331
        %p1334 = scmp.lt.s32.totalorder %s41, 1
        // Predicated region
        $region73: #{tpu_custom_call.1} parent=43 // pred_check
          %p1335 = pneg %p1334
        $region74: #{tpu_custom_call.1} parent=43 // pred_check_branch
          %1337 = sbr.rel (%p1335) target = $region76
        $region75: #{tpu_custom_call.1} parent=43 // pred_region
          %v1338 = vmul.f32 %v1322, 1.442695
          %v1339 = vpow.pop %v1338
          %v1340 = vmul.f32 %v1323, 1.442695
          %v1341 = vpow.pop %v1340
          %v1342 = vld [vmem:[%s352] sm:$0xf]
          %v1343 = vunpack.c.l.bf16 %v1342
          %v1345 = vcombine.high %v1343, %v1343
          %v1347 = vmul.f32 %v1339, %v1343
          %v1348 = vmul.f32 %v1341, %v1345
          %v1351 = vcombine.low %v1347, %v1348
          %v1353 = vadd.f32 %v1333, %v1351
          %1354 = vst [vmem:[%s385] sm:$0x77] %v1353
        $region76: #{tpu_custom_call.1} parent=43 // pred_fallthru
          _
        %p1355 = scmp.eq.s32.totalorder %s41, 1
        // Predicated region
        $region77: #{tpu_custom_call.1} parent=43 // pred_check
          %p1356 = pneg %p1355
        $region78: #{tpu_custom_call.1} parent=43 // pred_check_branch
          %1358 = sbr.rel (%p1356) target = $region80
        $region79: #{tpu_custom_call.1} parent=43 // pred_region
          %v1359 = vmax.f32 %v1333, -1.0
          %v1360 = vmin.f32 %v1359, 1.0
          %1361 = vst [vmem:[%s385] sm:$0x77] %v1360
        $region80: #{tpu_custom_call.1} parent=43 // pred_fallthru
          _
        %s1362 = sand.u32 %s196, 1
        %s1363 = scalar_lea.sflag [#allocation7], %s1362
        %s1364 = sand.u32 %s196, 1
        %s1365 = smul.addr %s1364, 8
        %s1366 = scalar_lea.vmem [#allocation16], %s1365
        // Predicated region
        $region81: #{tpu_custom_call.1} parent=43 // pred_check
          %p1367 = pneg %p206
        $region82: #{tpu_custom_call.1} parent=43 // pred_check_branch
          %1369 = sbr.rel (%p1367) target = $region84
        $region83: #{tpu_custom_call.1} parent=43 // pred_region
          %s1370 = smul.u32 2, %s40
          %s1372 = ssub.s32 128, 128
          %1373 = vsyncadd %s1363, %s1372
          %s1374 = smul.addr %s1370, 64
          %s1375 = scalar_lea.hbm %s8, %s1374
          %s1377 = sshll.u32 %s1366, 4
          %s1378 = int_to_ptr.vmem [resolvable:$true] %s1377
          %1380 = dma.vmem_to_hbm [thread:$0]  %s1378, 128, %s1375, %s1363
        $region84: #{tpu_custom_call.1} parent=43 // pred_fallthru
          _
      $region44: #{tpu_custom_call.1} parent=5 // pred_fallthru
        _
      %p1381 = scmp.le.s32.totalorder 2, %s31
      // Predicated region
      $region85: #{tpu_custom_call.1} parent=5 // pred_check
        %p1382 = pneg %p1381
      $region86: #{tpu_custom_call.1} parent=5 // pred_check_branch
        %1384 = sbr.rel (%p1382) target = $region88
      $region87: #{tpu_custom_call.1} parent=5 // pred_region
        %s1385 = ssub.s32 %s31, 2
        // Predicated region
        $region89: #{tpu_custom_call.1} parent=87 // pred_check
          %p1386 = pneg %p212
        $region90: #{tpu_custom_call.1} parent=87 // pred_check_branch
          %1388 = sbr.rel (%p1386) target = $region92
        $region91: #{tpu_custom_call.1} parent=87 // pred_region
          %s1389 = sand.u32 %s197, 1
          %s1390 = scalar_lea.sflag [#allocation7], %s1389
          %s1391 = sand.u32 %s197, 1
          %s1392 = smul.addr %s1391, 8
          %s1393 = scalar_lea.vmem [#allocation16], %s1392
          %1394 = dma.done %s1390, 128
        $region92: #{tpu_custom_call.1} parent=87 // pred_fallthru
          _
      $region88: #{tpu_custom_call.1} parent=5 // pred_fallthru
        _
    $region6: #{tpu_custom_call.1} parent=1 // loop_footer
      %s35 = sadd.s32 1, %s31
    $region7: #{tpu_custom_call.1} parent=1 // loop_footer_branch
      %30 = sbr.rel target = $region3
    $region8: #{tpu_custom_call.1} parent=1 // loop_exit
      _
    %1395 = vsyncpa [#allocation6], 1
    %s1396 = scalar_lea.sflag [#allocation6], 1
    %1397 = vsyncpa %s1396, 1
    %1398 = vsyncpa [#allocation9], 1
    %1399 = vsyncpa [#allocation12], 1
    %1400 = vsyncpa [#allocation15], 1
    %s1401 = scalar_lea.sflag [#allocation15], 1
    %1402 = vsyncpa %s1401, 1
    %1403 = vsyncpa [#allocation7], 1
    %s1404 = scalar_lea.sflag [#allocation7], 1
    %1405 = vsyncpa %s1404, 1

</llo_original>
